<compile_context>
chip_gen: v5e
topology: v5e:2x2
jax: 0.10.0
libtpu: 0.0.40
codegen_flags: <defaults>
</compile_context>

<pallas_src>
import numpy as np
import jax
import jax.numpy as jnp
from jax.experimental import pallas as pl
from jax.experimental.pallas import tpu as pltpu

_LANES = 128


def _make_freq_bands(n_freqs: int, log_space: bool):
    if log_space:
        bands = 2.0 ** np.linspace(0.0, n_freqs - 1, n_freqs)
    else:
        bands = np.linspace(2.0 ** 0.0, 2.0 ** (n_freqs - 1), n_freqs)
    return tuple(float(f) for f in bands.astype(np.float32))


def _round_up(a: int, b: int) -> int:
    return ((a + b - 1) // b) * b


def positional_encode(x: jax.Array, n_freqs: int, log_space: bool = False,
                      tile_m: int = 512) -> jax.Array:
    """Pallas-backed positional encoding.

    x: [..., d_input] float32 (any leading batch dims, any sizes).
    returns: [..., d_input * (1 + 2 * n_freqs)] with PyTorch's channel order
             [x, sin(f0*x), cos(f0*x), sin(f1*x), cos(f1*x), ...].
    """
    *batch, d_input = x.shape
    n_pts = int(np.prod(batch)) if batch else 1
    P = 1 + 2 * n_freqs
    d_output = d_input * P
    freqs = _make_freq_bands(n_freqs, log_space)

    # ---- lane-dense slab: flatten all elements into (m_pad, 128) ----
    total = n_pts * d_input
    m = pl.cdiv(total, _LANES)

    # Cap tile so double-buffered (in + P-part out) blocks stay well inside
    # the scoped-VMEM default on every generation (incl. v7x's 64 MiB chip).
    vmem_budget = 16 * 1024 * 1024
    bytes_per_row = 2 * (P + 1) * _LANES * 4          # in + out, x2 buffers
    tile_cap = max(8, (vmem_budget // bytes_per_row) // 8 * 8)
    tile = max(8, min(int(tile_m), tile_cap, _round_up(m, 8)))
    tile = _round_up(tile, 8)

    m_pad = _round_up(m, tile)
    if m_pad // tile > 1:                             # even grid → both v7x TCs busy
        m_pad = _round_up(m, 2 * tile)
    pad_elems = m_pad * _LANES - total

    x_flat = x.reshape(-1)
    if pad_elems:
        x_flat = jnp.pad(x_flat, (0, pad_elems))
    x_slab = x_flat.reshape(m_pad, _LANES)

    # ---- kernel: full-lane elementwise sin/cos, direct per-part stores ----
    def kernel(x_ref, o_ref):
        xv = x_ref[...]                               # (tile, 128) full-lane
        o_ref[0, :, :] = xv                           # identity part
        for k, f in enumerate(freqs):                 # static unroll
            xf = xv * f                               # VPU
            o_ref[2 * k + 1, :, :] = jnp.sin(xf)      # EUP
            o_ref[2 * k + 2, :, :] = jnp.cos(xf)      # EUP

    out_slab = pl.pallas_call(
        kernel,
        out_shape=jax.ShapeDtypeStruct((P, m_pad, _LANES), x.dtype),
        grid=(m_pad // tile,),
        in_specs=[pl.BlockSpec((tile, _LANES), lambda i: (i, 0))],
        out_specs=pl.BlockSpec((P, tile, _LANES), lambda i: (0, i, 0)),
        compiler_params=pltpu.CompilerParams(
            dimension_semantics=("parallel",)),
    )(x_slab)

    # ---- restore PyTorch layout: (P, m*128) -> (N, P, d) -> (..., P*d) ----
    out = out_slab.reshape(P, m_pad * _LANES)[:, :total]
    out = out.reshape(P, n_pts, d_input)
    out = jnp.transpose(out, (1, 0, 2))
    return out.reshape(*batch, d_output) if batch else out.reshape(d_output)


def positional_encode_ref(x: jax.Array, n_freqs: int, log_space: bool = False):
    """Pure-JAX reference mirroring the PyTorch forward exactly."""
    freqs = _make_freq_bands(n_freqs, log_space)
    outs = [x]
    for f in freqs:
        outs.append(jnp.sin(x * f))
        outs.append(jnp.cos(x * f))
    return jnp.concatenate(outs, axis=-1)


if __name__ == "__main__":
    # Small, deterministic example: 128 points with d_input=4 coords, 6 freqs.
    d_input = 4
    n_freqs = 6
    N = 128

    key = jax.random.PRNGKey(0)
    x = jax.random.normal(key, (N, d_input), dtype=jnp.float32)

    out = jax.block_until_ready(positional_encode(x, n_freqs=n_freqs,
                                                  log_space=False))
    expected = positional_encode_ref(x, n_freqs=n_freqs, log_space=False)
    assert out.shape == (N, d_input * (1 + 2 * n_freqs)), out.shape
    np.testing.assert_allclose(np.asarray(out), np.asarray(expected),
                               rtol=1e-6, atol=1e-6)

    # log_space=True branch.
    out_log = jax.block_until_ready(
        positional_encode(x, n_freqs=n_freqs, log_space=True))
    np.testing.assert_allclose(
        np.asarray(out_log),
        np.asarray(positional_encode_ref(x, n_freqs=n_freqs, log_space=True)),
        rtol=1e-6, atol=1e-6)

    # Awkward N / d_input (exercises the padding path, not a tile multiple).
    x_odd = jax.random.normal(jax.random.PRNGKey(1), (37, 3), dtype=jnp.float32)
    out_odd = jax.block_until_ready(
        positional_encode(x_odd, n_freqs=4, log_space=True))
    np.testing.assert_allclose(
        np.asarray(out_odd),
        np.asarray(positional_encode_ref(x_odd, n_freqs=4, log_space=True)),
        rtol=1e-6, atol=1e-6)

    # Leading batch dims, like the PyTorch module supports.
    x_b = jax.random.normal(jax.random.PRNGKey(2), (2, 16, 3), dtype=jnp.float32)
    out_b = jax.block_until_ready(
        positional_encode(x_b, n_freqs=4, log_space=False))
    np.testing.assert_allclose(
        np.asarray(out_b),
        np.asarray(positional_encode_ref(x_b, n_freqs=4, log_space=False)),
        rtol=1e-6, atol=1e-6)

    print("KERNEL_OK")
</pallas_src>

<mosaic_0001>
module attributes {stable_mosaic.version = 11 : i64} {
  func.func @kernel(%arg0: i32, %arg1: memref<8x128xf32, #tpu.memory_space<vmem>>, %arg2: memref<13x8x128xf32, #tpu.memory_space<vmem>>) attributes {dimension_semantics = [#tpu.dimension_semantics<parallel>], iteration_bounds = array<i64: 1>, scalar_prefetch = 0 : i64, scratch_operands = 0 : i64, tpu.core_type = #tpu.core_type<tc>, window_params = [{transform_indices = @transform_0, window_bounds = array<i64: 8, 128>}, {transform_indices = @transform_1, window_bounds = array<i64: 13, 8, 128>}]} {
    %c0 = arith.constant 0 : index
    %c0_0 = arith.constant 0 : index
    %0 = vector.load %arg1[%c0, %c0_0] : memref<8x128xf32, #tpu.memory_space<vmem>>, vector<8x128xf32>
    %c0_1 = arith.constant 0 : index
    %c0_2 = arith.constant 0 : index
    %c0_3 = arith.constant 0 : index
    %1 = vector.load %arg2[%c0_1, %c0_2, %c0_3] : memref<13x8x128xf32, #tpu.memory_space<vmem>>, vector<1x8x128xf32>
    %2 = vector.shape_cast %1 : vector<1x8x128xf32> to vector<8x128xf32>
    %3 = vector.shape_cast %0 : vector<8x128xf32> to vector<1x8x128xf32>
    tpu.vector_store %arg2[%c0_1, %c0_2, %c0_3], %3 {strides = array<i32>} : memref<13x8x128xf32, #tpu.memory_space<vmem>>, vector<1x8x128xf32>,
    %cst = arith.constant 1.000000e+00 : f32
    %4 = vector.broadcast %cst : f32 to vector<8x128xf32>
    %5 = arith.mulf %0, %4 : vector<8x128xf32>
    %6 = math.sin %5 : vector<8x128xf32>
    %c1 = arith.constant 1 : index
    %c0_4 = arith.constant 0 : index
    %c0_5 = arith.constant 0 : index
    %7 = vector.load %arg2[%c1, %c0_4, %c0_5] : memref<13x8x128xf32, #tpu.memory_space<vmem>>, vector<1x8x128xf32>
    %8 = vector.shape_cast %7 : vector<1x8x128xf32> to vector<8x128xf32>
    %9 = vector.shape_cast %6 : vector<8x128xf32> to vector<1x8x128xf32>
    tpu.vector_store %arg2[%c1, %c0_4, %c0_5], %9 {strides = array<i32>} : memref<13x8x128xf32, #tpu.memory_space<vmem>>, vector<1x8x128xf32>,
    %10 = math.cos %5 : vector<8x128xf32>
    %c2 = arith.constant 2 : index
    %c0_6 = arith.constant 0 : index
    %c0_7 = arith.constant 0 : index
    %11 = vector.load %arg2[%c2, %c0_6, %c0_7] : memref<13x8x128xf32, #tpu.memory_space<vmem>>, vector<1x8x128xf32>
    %12 = vector.shape_cast %11 : vector<1x8x128xf32> to vector<8x128xf32>
    %13 = vector.shape_cast %10 : vector<8x128xf32> to vector<1x8x128xf32>
    tpu.vector_store %arg2[%c2, %c0_6, %c0_7], %13 {strides = array<i32>} : memref<13x8x128xf32, #tpu.memory_space<vmem>>, vector<1x8x128xf32>,
    %cst_8 = arith.constant 7.1999998 : f32
    %14 = vector.broadcast %cst_8 : f32 to vector<8x128xf32>
    %15 = arith.mulf %0, %14 : vector<8x128xf32>
    %16 = math.sin %15 : vector<8x128xf32>
    %c3 = arith.constant 3 : index
    %c0_9 = arith.constant 0 : index
    %c0_10 = arith.constant 0 : index
    %17 = vector.load %arg2[%c3, %c0_9, %c0_10] : memref<13x8x128xf32, #tpu.memory_space<vmem>>, vector<1x8x128xf32>
    %18 = vector.shape_cast %17 : vector<1x8x128xf32> to vector<8x128xf32>
    %19 = vector.shape_cast %16 : vector<8x128xf32> to vector<1x8x128xf32>
    tpu.vector_store %arg2[%c3, %c0_9, %c0_10], %19 {strides = array<i32>} : memref<13x8x128xf32, #tpu.memory_space<vmem>>, vector<1x8x128xf32>,
    %20 = math.cos %15 : vector<8x128xf32>
    %c4 = arith.constant 4 : index
    %c0_11 = arith.constant 0 : index
    %c0_12 = arith.constant 0 : index
    %21 = vector.load %arg2[%c4, %c0_11, %c0_12] : memref<13x8x128xf32, #tpu.memory_space<vmem>>, vector<1x8x128xf32>
    %22 = vector.shape_cast %21 : vector<1x8x128xf32> to vector<8x128xf32>
    %23 = vector.shape_cast %20 : vector<8x128xf32> to vector<1x8x128xf32>
    tpu.vector_store %arg2[%c4, %c0_11, %c0_12], %23 {strides = array<i32>} : memref<13x8x128xf32, #tpu.memory_space<vmem>>, vector<1x8x128xf32>,
    %cst_13 = arith.constant 1.340000e+01 : f32
    %24 = vector.broadcast %cst_13 : f32 to vector<8x128xf32>
    %25 = arith.mulf %0, %24 : vector<8x128xf32>
    %26 = math.sin %25 : vector<8x128xf32>
    %c5 = arith.constant 5 : index
    %c0_14 = arith.constant 0 : index
    %c0_15 = arith.constant 0 : index
    %27 = vector.load %arg2[%c5, %c0_14, %c0_15] : memref<13x8x128xf32, #tpu.memory_space<vmem>>, vector<1x8x128xf32>
    %28 = vector.shape_cast %27 : vector<1x8x128xf32> to vector<8x128xf32>
    %29 = vector.shape_cast %26 : vector<8x128xf32> to vector<1x8x128xf32>
    tpu.vector_store %arg2[%c5, %c0_14, %c0_15], %29 {strides = array<i32>} : memref<13x8x128xf32, #tpu.memory_space<vmem>>, vector<1x8x128xf32>,
    %30 = math.cos %25 : vector<8x128xf32>
    %c6 = arith.constant 6 : index
    %c0_16 = arith.constant 0 : index
    %c0_17 = arith.constant 0 : index
    %31 = vector.load %arg2[%c6, %c0_16, %c0_17] : memref<13x8x128xf32, #tpu.memory_space<vmem>>, vector<1x8x128xf32>
    %32 = vector.shape_cast %31 : vector<1x8x128xf32> to vector<8x128xf32>
    %33 = vector.shape_cast %30 : vector<8x128xf32> to vector<1x8x128xf32>
    tpu.vector_store %arg2[%c6, %c0_16, %c0_17], %33 {strides = array<i32>} : memref<13x8x128xf32, #tpu.memory_space<vmem>>, vector<1x8x128xf32>,
    %cst_18 = arith.constant 1.960000e+01 : f32
    %34 = vector.broadcast %cst_18 : f32 to vector<8x128xf32>
    %35 = arith.mulf %0, %34 : vector<8x128xf32>
    %36 = math.sin %35 : vector<8x128xf32>
    %c7 = arith.constant 7 : index
    %c0_19 = arith.constant 0 : index
    %c0_20 = arith.constant 0 : index
    %37 = vector.load %arg2[%c7, %c0_19, %c0_20] : memref<13x8x128xf32, #tpu.memory_space<vmem>>, vector<1x8x128xf32>
    %38 = vector.shape_cast %37 : vector<1x8x128xf32> to vector<8x128xf32>
    %39 = vector.shape_cast %36 : vector<8x128xf32> to vector<1x8x128xf32>
    tpu.vector_store %arg2[%c7, %c0_19, %c0_20], %39 {strides = array<i32>} : memref<13x8x128xf32, #tpu.memory_space<vmem>>, vector<1x8x128xf32>,
    %40 = math.cos %35 : vector<8x128xf32>
    %c8 = arith.constant 8 : index
    %c0_21 = arith.constant 0 : index
    %c0_22 = arith.constant 0 : index
    %41 = vector.load %arg2[%c8, %c0_21, %c0_22] : memref<13x8x128xf32, #tpu.memory_space<vmem>>, vector<1x8x128xf32>
    %42 = vector.shape_cast %41 : vector<1x8x128xf32> to vector<8x128xf32>
    %43 = vector.shape_cast %40 : vector<8x128xf32> to vector<1x8x128xf32>
    tpu.vector_store %arg2[%c8, %c0_21, %c0_22], %43 {strides = array<i32>} : memref<13x8x128xf32, #tpu.memory_space<vmem>>, vector<1x8x128xf32>,
    %cst_23 = arith.constant 2.580000e+01 : f32
    %44 = vector.broadcast %cst_23 : f32 to vector<8x128xf32>
    %45 = arith.mulf %0, %44 : vector<8x128xf32>
    %46 = math.sin %45 : vector<8x128xf32>
    %c9 = arith.constant 9 : index
    %c0_24 = arith.constant 0 : index
    %c0_25 = arith.constant 0 : index
    %47 = vector.load %arg2[%c9, %c0_24, %c0_25] : memref<13x8x128xf32, #tpu.memory_space<vmem>>, vector<1x8x128xf32>
    %48 = vector.shape_cast %47 : vector<1x8x128xf32> to vector<8x128xf32>
    %49 = vector.shape_cast %46 : vector<8x128xf32> to vector<1x8x128xf32>
    tpu.vector_store %arg2[%c9, %c0_24, %c0_25], %49 {strides = array<i32>} : memref<13x8x128xf32, #tpu.memory_space<vmem>>, vector<1x8x128xf32>,
    %50 = math.cos %45 : vector<8x128xf32>
    %c10 = arith.constant 10 : index
    %c0_26 = arith.constant 0 : index
    %c0_27 = arith.constant 0 : index
    %51 = vector.load %arg2[%c10, %c0_26, %c0_27] : memref<13x8x128xf32, #tpu.memory_space<vmem>>, vector<1x8x128xf32>
    %52 = vector.shape_cast %51 : vector<1x8x128xf32> to vector<8x128xf32>
    %53 = vector.shape_cast %50 : vector<8x128xf32> to vector<1x8x128xf32>
    tpu.vector_store %arg2[%c10, %c0_26, %c0_27], %53 {strides = array<i32>} : memref<13x8x128xf32, #tpu.memory_space<vmem>>, vector<1x8x128xf32>,
    %cst_28 = arith.constant 3.200000e+01 : f32
    %54 = vector.broadcast %cst_28 : f32 to vector<8x128xf32>
    %55 = arith.mulf %0, %54 : vector<8x128xf32>
    %56 = math.sin %55 : vector<8x128xf32>
    %c11 = arith.constant 11 : index
    %c0_29 = arith.constant 0 : index
    %c0_30 = arith.constant 0 : index
    %57 = vector.load %arg2[%c11, %c0_29, %c0_30] : memref<13x8x128xf32, #tpu.memory_space<vmem>>, vector<1x8x128xf32>
    %58 = vector.shape_cast %57 : vector<1x8x128xf32> to vector<8x128xf32>
    %59 = vector.shape_cast %56 : vector<8x128xf32> to vector<1x8x128xf32>
    tpu.vector_store %arg2[%c11, %c0_29, %c0_30], %59 {strides = array<i32>} : memref<13x8x128xf32, #tpu.memory_space<vmem>>, vector<1x8x128xf32>,
    %60 = math.cos %55 : vector<8x128xf32>
    %c12 = arith.constant 12 : index
    %c0_31 = arith.constant 0 : index
    %c0_32 = arith.constant 0 : index
    %61 = vector.load %arg2[%c12, %c0_31, %c0_32] : memref<13x8x128xf32, #tpu.memory_space<vmem>>, vector<1x8x128xf32>
    %62 = vector.shape_cast %61 : vector<1x8x128xf32> to vector<8x128xf32>
    %63 = vector.shape_cast %60 : vector<8x128xf32> to vector<1x8x128xf32>
    tpu.vector_store %arg2[%c12, %c0_31, %c0_32], %63 {strides = array<i32>} : memref<13x8x128xf32, #tpu.memory_space<vmem>>, vector<1x8x128xf32>,
    return
  }
  func.func @transform_0(%arg0: i32) -> (i32, i32) {
    %c0_i32 = arith.constant 0 : i32
    %c0_i32_0 = arith.constant 0 : i32
    return %arg0, %c0_i32 : i32, i32
  }
  func.func @transform_1(%arg0: i32) -> (i32, i32, i32) {
    %c0_i32 = arith.constant 0 : i32
    %c0_i32_0 = arith.constant 0 : i32
    %c0_i32_1 = arith.constant 0 : i32
    return %c0_i32, %arg0, %c0_i32_0 : i32, i32, i32
  }
}

</mosaic_0001>

<llo_original>
// kernel: tpu_custom_call.1
$region0: #{tpu_custom_call.1}
  #allocation0 [shape = 'u32[]', space=smem, size = 0x4, offset = 0x4, fixed_abs, tag = 'smem constant byte address 0x4 - core index']
  #allocation1 [shape = 'u32[72,128]{1,0:T(1,128)}', space=vmem, size = 0x9000, scoped, tag = 'internal scratch']
  %s0 = inlined_call_operand.hbm [shape: f32[8,128], index: 0, kind: input, shape index: {}]
  %s1 = inlined_call_operand.hbm [shape: f32[13,8,128], index: 1, kind: output, shape index: {}]
  %s2 = sld [smem:[#allocation0]]
  $region18: #{tpu_custom_call.1} parent=0
    _
  %s4 = ssub.s32 1, %s2
  %s5 = scalar_select 0, %s4, %s2
  $region1: #{tpu_custom_call.1} parent=0
    #allocation2 [shape = 'u8[4096]{0}', space=vmem, size = 0x1000, scoped, tag = 'input window, operand 0, single buffered']
    #allocation3 [shape = 's32[1]{0}', space=sflag, size = 0x4, scoped, tag = 'scoped memory for tpu_custom_call.1']
    #allocation4 [shape = 's32[1]{0}', space=sflag, size = 0x4, scoped, tag = 'scoped memory for tpu_custom_call.1']
    #allocation5 [shape = 'u8[53248]{0}', space=vmem, size = 0xd000, scoped, tag = 'output window, operand 0, single buffered']
    %6 = vsyncpa [#allocation3], 0
    %7 = vsyncpa [#allocation4], 0
    // Predicated region
    $region2: #{tpu_custom_call.1} parent=1 // pred_check
      _
    $region3: #{tpu_custom_call.1} parent=1 // pred_check_branch
      %9 = sbr.rel (0) target = $region5
    $region4: #{tpu_custom_call.1} parent=1 // pred_region
      %11 = vsyncadd [#allocation3], 0
      %s13 = sshll.u32 %s0, 4
      %s14 = int_to_ptr.hbm [resolvable:$true] %s13
      %s15 = sshll.u32 [#allocation2], 4
      %s16 = int_to_ptr.vmem [resolvable:$true] %s15
      %18 = dma.hbm_to_vmem [thread:$0]  %s14, 128, %s16, [#allocation3]
    $region5: #{tpu_custom_call.1} parent=1 // pred_fallthru
      _
    // Predicated region
    $region6: #{tpu_custom_call.1} parent=1 // pred_check
      _
    $region7: #{tpu_custom_call.1} parent=1 // pred_check_branch
      %20 = sbr.rel (0) target = $region9
    $region8: #{tpu_custom_call.1} parent=1 // pred_region
      %22 = dma.done [#allocation3], 128
    $region9: #{tpu_custom_call.1} parent=1 // pred_fallthru
      _
    %v23 = vld [vmem:[#allocation2] sm:$0xff]
    %24 = vst [vmem:[#allocation5] sm:$0xff] %v23
    %v25 = vand.u32 2147483647, %v23
    %vm26 = vcmp.le.f32.partialorder %v25, 0.7853982
    %vm27 = vcmp.lt.s32.totalorder %v23, 0
    %v28 = vand.u32 %v23, 2139095040
    %v29 = vshrl.u32 %v28, 23
    %v30 = vsub.s32 %v29, 127
    %v31 = vand.u32 2147483647, %v23
    %v32 = vand.u32 %v31, 8388607
    %v33 = vor.u32 %v32, 8388608
    %v34 = vsub.s32 0, %v33
    %v35 = vadd.s32 %v30, 1
    %vm36 = vcmp.gt.s32.totalorder %v35, 0
    %v37 = vsel %vm36, %v35, 0
    %v38 = vshrl.u32 %v37, 5
    %v39 = vand.u32 %v37, 31
    %v40 = vsub.s32 32, %v39
    %v41 = vshrl.u32 683565275, %v40
    %v42 = vshll.u32 683565275, %v39
    %v43 = vshrl.u32 2475754826, %v40
    %v44 = vor.u32 %v42, %v43
    %v45 = vshll.u32 2475754826, %v39
    %v46 = vshrl.u32 2131351028, %v40
    %v47 = vor.u32 %v45, %v46
    %v48 = vshll.u32 2131351028, %v39
    %v49 = vshrl.u32 2102212464, %v40
    %v50 = vor.u32 %v48, %v49
    %v51 = vshll.u32 2102212464, %v39
    %v52 = vshrl.u32 920167782, %v40
    %v53 = vor.u32 %v51, %v52
    %v54 = vshll.u32 920167782, %v39
    %v55 = vshrl.u32 1326507024, %v40
    %v56 = vor.u32 %v54, %v55
    %vm57 = vcmp.lt.s32.totalorder %v38, 1
    %vm58 = vcmp.lt.s32.totalorder %v38, 2
    %vm59 = vcmp.lt.s32.totalorder %v38, 3
    %vm60 = vcmp.lt.s32.totalorder %v38, 4
    %v61 = vsel %vm57, %v41, %v44
    %v62 = vsel %vm60, %v50, 2102212464
    %v63 = vsel %vm59, %v47, %v62
    %v64 = vsel %vm58, %v61, %v63
    %v65 = vsel %vm57, %v44, %v47
    %v66 = vsel %vm60, %v53, 920167782
    %v67 = vsel %vm59, %v50, %v66
    %v68 = vsel %vm58, %v65, %v67
    %v69 = vsel %vm57, %v47, %v50
    %v70 = vsel %vm60, %v56, 1326507024
    %v71 = vsel %vm59, %v53, %v70
    %v72 = vsel %vm58, %v69, %v71
    %v73 = vshll.u32 %v33, 8
    %v74 = vand.u32 %v73, 65535
    %v75 = vshrl.u32 %v73, 16
    %v76 = vand.u32 %v72, 65535
    %v77 = vshrl.u32 %v72, 16
    %v78 = vmul.u32 %v74, %v76
    %v79 = vmul.u32 %v74, %v77
    %v80 = vmul.u32 %v75, %v76
    %v81 = vmul.u32 %v75, %v77
    %v82 = vshll.u32 %v79, 16
    %v83 = vshrl.u32 %v79, 16
    %v84 = vshll.u32 %v80, 16
    %v85 = vshrl.u32 %v80, 16
    %vm86 = vc.u32 %v78, %v82
    %v87 = vsel %vm86, 1, 0
    %v88 = vadd.s32 %v78, %v82
    %v89 = vadd.s32 %v81, %v87
    %vm90 = vc.u32 %v88, %v84
    %v91 = vsel %vm90, 1, 0
    %v92 = vadd.s32 %v88, %v84
    %v93 = vadd.s32 %v89, %v91
    %v94 = vadd.s32 %v93, %v83
    %v95 = vadd.s32 %v94, %v85
    %v96 = vand.u32 %v73, 65535
    %v97 = vshrl.u32 %v73, 16
    %v98 = vand.u32 %v68, 65535
    %v99 = vshrl.u32 %v68, 16
    %v100 = vmul.u32 %v96, %v98
    %v101 = vmul.u32 %v96, %v99
    %v102 = vmul.u32 %v97, %v98
    %v103 = vmul.u32 %v97, %v99
    %v104 = vshll.u32 %v101, 16
    %v105 = vshrl.u32 %v101, 16
    %v106 = vshll.u32 %v102, 16
    %v107 = vshrl.u32 %v102, 16
    %vm108 = vc.u32 %v100, %v104
    %v109 = vsel %vm108, 1, 0
    %v110 = vadd.s32 %v100, %v104
    %v111 = vadd.s32 %v103, %v109
    %vm112 = vc.u32 %v110, %v106
    %v113 = vsel %vm112, 1, 0
    %v114 = vadd.s32 %v110, %v106
    %v115 = vadd.s32 %v111, %v113
    %v116 = vadd.s32 %v115, %v105
    %v117 = vadd.s32 %v116, %v107
    %v118 = vmul.u32 %v73, %v64
    %v119 = vadd.s32 %v95, %v114
    %vm120 = vc.u32 %v95, %v114
    %v121 = vadd.s32 %v117, 1
    %v122 = vsel %vm120, %v121, %v117
    %v123 = vadd.s32 %v118, %v122
    %v124 = vadd.s32 %v123, 536870912
    %v125 = vshrl.u32 %v124, 30
    %v126 = vshll.u32 %v125, 30
    %v127 = vsub.s32 %v123, %v126
    %vm128 = vcmp.lt.s32.totalorder %v127, 0
    %v129 = vsub.s32 0, %v127
    %v130 = vsel %vm128, %v129, %v127
    %v131 = vclz %v130
    %v132 = vsub.s32 %v131, 2
    %vm133 = vcmp.gt.s32.totalorder 0, %v132
    %v134 = vsel %vm133, 0, %v132
    %v135 = vsub.s32 32, %v134
    %v136 = vshll.u32 %v127, %v134
    %v137 = vshrl.u32 %v119, %v135
    %v138 = vor.u32 %v136, %v137
    %v139 = vsub.s32 4294967266, %v134
    %v140 = vadd.s32 %v139, 127
    %v141 = vshll.u32 %v140, 23
    %v142 = vor.u32 4788187, %v141
    %v143 = vand.u32 2147483647, %v142
    %v145 = vcvt.s32.f32 %v138
    %v146 = vmul.f32 %v145, %v143
    %v147 = vxor.u32 %v146, 2147483648
    %v148 = vsel %vm27, %v147, %v146
    %v149 = vsub.s32 4, %v125
    %v150 = vsel %vm27, %v149, %v125
    %v151 = vsel %vm26, %v23, %v148
    %v152 = vsel %vm26, 0, %v150
    %v153 = vmul.f32 %v151, %v151
    %v154 = vmul.f32 %v153, -0.001358992
    %v155 = vadd.f32 %v154, 0.041655596
    %v156 = vmul.f32 %v153, %v155
    %v157 = vadd.f32 %v156, -0.4999988
    %v158 = vmul.f32 %v153, %v157
    %v159 = vadd.f32 1.0, %v158
    %v160 = vmul.f32 %v151, %v151
    %v161 = vmul.f32 %v160, -0.00019511016
    %v162 = vadd.f32 %v161, 0.008332121
    %v163 = vmul.f32 %v160, %v162
    %v164 = vadd.f32 %v163, -0.16666654
    %v165 = vmul.f32 %v160, %v164
    %v166 = vadd.f32 %v165, 1.0
    %v167 = vmul.f32 %v166, %v151
    %vm168 = vweird.f32 %v23
    %v169 = vadd.s32 %v152, 3
    %v170 = vand.u32 %v169, 3
    %vm171 = vcmp.lt.s32.totalorder %v170, 2
    %vm172 = vcmp.eq.s32.totalorder %v170, 0
    %v173 = vxor.u32 %v167, 2147483648
    %v174 = vsel %vm172, %v159, %v173
    %vm175 = vcmp.eq.s32.totalorder %v170, 2
    %v176 = vxor.u32 %v159, 2147483648
    %v177 = vsel %vm175, %v176, %v167
    %v178 = vsel %vm171, %v174, %v177
    %v179 = vsel %vm168, nan, %v178
    %s180 = scalar_lea.vmem [#allocation5], 8
    %181 = vst [vmem:[%s180] sm:$0xff] %v179
    %v182 = vand.u32 2147483647, %v23
    %vm183 = vcmp.le.f32.partialorder %v182, 0.7853982
    %vm184 = vcmp.lt.s32.totalorder %v23, 0
    %v185 = vand.u32 %v23, 2139095040
    %v186 = vshrl.u32 %v185, 23
    %v187 = vsub.s32 %v186, 127
    %v188 = vand.u32 2147483647, %v23
    %v189 = vand.u32 %v188, 8388607
    %v190 = vor.u32 %v189, 8388608
    %v191 = vsub.s32 0, %v190
    %v192 = vadd.s32 %v187, 1
    %vm193 = vcmp.gt.s32.totalorder %v192, 0
    %v194 = vsel %vm193, %v192, 0
    %v195 = vshrl.u32 %v194, 5
    %v196 = vand.u32 %v194, 31
    %v197 = vsub.s32 32, %v196
    %v198 = vshrl.u32 683565275, %v197
    %v199 = vshll.u32 683565275, %v196
    %v200 = vshrl.u32 2475754826, %v197
    %v201 = vor.u32 %v199, %v200
    %v202 = vshll.u32 2475754826, %v196
    %v203 = vshrl.u32 2131351028, %v197
    %v204 = vor.u32 %v202, %v203
    %v205 = vshll.u32 2131351028, %v196
    %v206 = vshrl.u32 2102212464, %v197
    %v207 = vor.u32 %v205, %v206
    %v208 = vshll.u32 2102212464, %v196
    %v209 = vshrl.u32 920167782, %v197
    %v210 = vor.u32 %v208, %v209
    %v211 = vshll.u32 920167782, %v196
    %v212 = vshrl.u32 1326507024, %v197
    %v213 = vor.u32 %v211, %v212
    %vm214 = vcmp.lt.s32.totalorder %v195, 1
    %vm215 = vcmp.lt.s32.totalorder %v195, 2
    %vm216 = vcmp.lt.s32.totalorder %v195, 3
    %vm217 = vcmp.lt.s32.totalorder %v195, 4
    %v218 = vsel %vm214, %v198, %v201
    %v219 = vsel %vm217, %v207, 2102212464
    %v220 = vsel %vm216, %v204, %v219
    %v221 = vsel %vm215, %v218, %v220
    %v222 = vsel %vm214, %v201, %v204
    %v223 = vsel %vm217, %v210, 920167782
    %v224 = vsel %vm216, %v207, %v223
    %v225 = vsel %vm215, %v222, %v224
    %v226 = vsel %vm214, %v204, %v207
    %v227 = vsel %vm217, %v213, 1326507024
    %v228 = vsel %vm216, %v210, %v227
    %v229 = vsel %vm215, %v226, %v228
    %v230 = vshll.u32 %v190, 8
    %v231 = vand.u32 %v230, 65535
    %v232 = vshrl.u32 %v230, 16
    %v233 = vand.u32 %v229, 65535
    %v234 = vshrl.u32 %v229, 16
    %v235 = vmul.u32 %v231, %v233
    %v236 = vmul.u32 %v231, %v234
    %v237 = vmul.u32 %v232, %v233
    %v238 = vmul.u32 %v232, %v234
    %v239 = vshll.u32 %v236, 16
    %v240 = vshrl.u32 %v236, 16
    %v241 = vshll.u32 %v237, 16
    %v242 = vshrl.u32 %v237, 16
    %vm243 = vc.u32 %v235, %v239
    %v244 = vsel %vm243, 1, 0
    %v245 = vadd.s32 %v235, %v239
    %v246 = vadd.s32 %v238, %v244
    %vm247 = vc.u32 %v245, %v241
    %v248 = vsel %vm247, 1, 0
    %v249 = vadd.s32 %v245, %v241
    %v250 = vadd.s32 %v246, %v248
    %v251 = vadd.s32 %v250, %v240
    %v252 = vadd.s32 %v251, %v242
    %v253 = vand.u32 %v230, 65535
    %v254 = vshrl.u32 %v230, 16
    %v255 = vand.u32 %v225, 65535
    %v256 = vshrl.u32 %v225, 16
    %v257 = vmul.u32 %v253, %v255
    %v258 = vmul.u32 %v253, %v256
    %v259 = vmul.u32 %v254, %v255
    %v260 = vmul.u32 %v254, %v256
    %v261 = vshll.u32 %v258, 16
    %v262 = vshrl.u32 %v258, 16
    %v263 = vshll.u32 %v259, 16
    %v264 = vshrl.u32 %v259, 16
    %vm265 = vc.u32 %v257, %v261
    %v266 = vsel %vm265, 1, 0
    %v267 = vadd.s32 %v257, %v261
    %v268 = vadd.s32 %v260, %v266
    %vm269 = vc.u32 %v267, %v263
    %v270 = vsel %vm269, 1, 0
    %v271 = vadd.s32 %v267, %v263
    %v272 = vadd.s32 %v268, %v270
    %v273 = vadd.s32 %v272, %v262
    %v274 = vadd.s32 %v273, %v264
    %v275 = vmul.u32 %v230, %v221
    %v276 = vadd.s32 %v252, %v271
    %vm277 = vc.u32 %v252, %v271
    %v278 = vadd.s32 %v274, 1
    %v279 = vsel %vm277, %v278, %v274
    %v280 = vadd.s32 %v275, %v279
    %v281 = vadd.s32 %v280, 536870912
    %v282 = vshrl.u32 %v281, 30
    %v283 = vshll.u32 %v282, 30
    %v284 = vsub.s32 %v280, %v283
    %vm285 = vcmp.lt.s32.totalorder %v284, 0
    %v286 = vsub.s32 0, %v284
    %v287 = vsel %vm285, %v286, %v284
    %v288 = vclz %v287
    %v289 = vsub.s32 %v288, 2
    %vm290 = vcmp.gt.s32.totalorder 0, %v289
    %v291 = vsel %vm290, 0, %v289
    %v292 = vsub.s32 32, %v291
    %v293 = vshll.u32 %v284, %v291
    %v294 = vshrl.u32 %v276, %v292
    %v295 = vor.u32 %v293, %v294
    %v296 = vsub.s32 4294967266, %v291
    %v297 = vadd.s32 %v296, 127
    %v298 = vshll.u32 %v297, 23
    %v299 = vor.u32 4788187, %v298
    %v300 = vand.u32 2147483647, %v299
    %v302 = vcvt.s32.f32 %v295
    %v303 = vmul.f32 %v302, %v300
    %v304 = vxor.u32 %v303, 2147483648
    %v305 = vsel %vm184, %v304, %v303
    %v306 = vsub.s32 4, %v282
    %v307 = vsel %vm184, %v306, %v282
    %v308 = vsel %vm183, %v23, %v305
    %v309 = vsel %vm183, 0, %v307
    %v310 = vmul.f32 %v308, %v308
    %v311 = vmul.f32 %v310, -0.001358992
    %v312 = vadd.f32 %v311, 0.041655596
    %v313 = vmul.f32 %v310, %v312
    %v314 = vadd.f32 %v313, -0.4999988
    %v315 = vmul.f32 %v310, %v314
    %v316 = vadd.f32 1.0, %v315
    %v317 = vmul.f32 %v308, %v308
    %v318 = vmul.f32 %v317, -0.00019511016
    %v319 = vadd.f32 %v318, 0.008332121
    %v320 = vmul.f32 %v317, %v319
    %v321 = vadd.f32 %v320, -0.16666654
    %v322 = vmul.f32 %v317, %v321
    %v323 = vadd.f32 %v322, 1.0
    %v324 = vmul.f32 %v323, %v308
    %vm325 = vweird.f32 %v23
    %v326 = vand.u32 %v309, 3
    %vm327 = vcmp.lt.s32.totalorder %v326, 2
    %vm328 = vcmp.eq.s32.totalorder %v326, 0
    %v329 = vxor.u32 %v324, 2147483648
    %v330 = vsel %vm328, %v316, %v329
    %vm331 = vcmp.eq.s32.totalorder %v326, 2
    %v332 = vxor.u32 %v316, 2147483648
    %v333 = vsel %vm331, %v332, %v324
    %v334 = vsel %vm327, %v330, %v333
    %v335 = vsel %vm325, nan, %v334
    %s336 = scalar_lea.vmem [#allocation5], 16
    %337 = vst [vmem:[%s336] sm:$0xff] %v335
    %v338 = vmul.f32 %v23, 7.2
    %v339 = vand.u32 2147483647, %v338
    %vm340 = vcmp.le.f32.partialorder %v339, 0.7853982
    %vm341 = vcmp.lt.s32.totalorder %v338, 0
    %v342 = vand.u32 %v338, 2139095040
    %v343 = vshrl.u32 %v342, 23
    %v344 = vsub.s32 %v343, 127
    %v345 = vand.u32 2147483647, %v338
    %v346 = vand.u32 %v345, 8388607
    %v347 = vor.u32 %v346, 8388608
    %v348 = vsub.s32 0, %v347
    %v349 = vadd.s32 %v344, 1
    %vm350 = vcmp.gt.s32.totalorder %v349, 0
    %v351 = vsel %vm350, %v349, 0
    %v352 = vshrl.u32 %v351, 5
    %v353 = vand.u32 %v351, 31
    %v354 = vsub.s32 32, %v353
    %v355 = vshrl.u32 683565275, %v354
    %v356 = vshll.u32 683565275, %v353
    %v357 = vshrl.u32 2475754826, %v354
    %v358 = vor.u32 %v356, %v357
    %v359 = vshll.u32 2475754826, %v353
    %v360 = vshrl.u32 2131351028, %v354
    %v361 = vor.u32 %v359, %v360
    %v362 = vshll.u32 2131351028, %v353
    %v363 = vshrl.u32 2102212464, %v354
    %v364 = vor.u32 %v362, %v363
    %v365 = vshll.u32 2102212464, %v353
    %v366 = vshrl.u32 920167782, %v354
    %v367 = vor.u32 %v365, %v366
    %v368 = vshll.u32 920167782, %v353
    %v369 = vshrl.u32 1326507024, %v354
    %v370 = vor.u32 %v368, %v369
    %vm371 = vcmp.lt.s32.totalorder %v352, 1
    %vm372 = vcmp.lt.s32.totalorder %v352, 2
    %vm373 = vcmp.lt.s32.totalorder %v352, 3
    %vm374 = vcmp.lt.s32.totalorder %v352, 4
    %v375 = vsel %vm371, %v355, %v358
    %v376 = vsel %vm374, %v364, 2102212464
    %v377 = vsel %vm373, %v361, %v376
    %v378 = vsel %vm372, %v375, %v377
    %v379 = vsel %vm371, %v358, %v361
    %v380 = vsel %vm374, %v367, 920167782
    %v381 = vsel %vm373, %v364, %v380
    %v382 = vsel %vm372, %v379, %v381
    %v383 = vsel %vm371, %v361, %v364
    %v384 = vsel %vm374, %v370, 1326507024
    %v385 = vsel %vm373, %v367, %v384
    %v386 = vsel %vm372, %v383, %v385
    %v387 = vshll.u32 %v347, 8
    %v388 = vand.u32 %v387, 65535
    %v389 = vshrl.u32 %v387, 16
    %v390 = vand.u32 %v386, 65535
    %v391 = vshrl.u32 %v386, 16
    %v392 = vmul.u32 %v388, %v390
    %v393 = vmul.u32 %v388, %v391
    %v394 = vmul.u32 %v389, %v390
    %v395 = vmul.u32 %v389, %v391
    %v396 = vshll.u32 %v393, 16
    %v397 = vshrl.u32 %v393, 16
    %v398 = vshll.u32 %v394, 16
    %v399 = vshrl.u32 %v394, 16
    %vm400 = vc.u32 %v392, %v396
    %v401 = vsel %vm400, 1, 0
    %v402 = vadd.s32 %v392, %v396
    %v403 = vadd.s32 %v395, %v401
    %vm404 = vc.u32 %v402, %v398
    %v405 = vsel %vm404, 1, 0
    %v406 = vadd.s32 %v402, %v398
    %v407 = vadd.s32 %v403, %v405
    %v408 = vadd.s32 %v407, %v397
    %v409 = vadd.s32 %v408, %v399
    %v410 = vand.u32 %v387, 65535
    %v411 = vshrl.u32 %v387, 16
    %v412 = vand.u32 %v382, 65535
    %v413 = vshrl.u32 %v382, 16
    %v414 = vmul.u32 %v410, %v412
    %v415 = vmul.u32 %v410, %v413
    %v416 = vmul.u32 %v411, %v412
    %v417 = vmul.u32 %v411, %v413
    %v418 = vshll.u32 %v415, 16
    %v419 = vshrl.u32 %v415, 16
    %v420 = vshll.u32 %v416, 16
    %v421 = vshrl.u32 %v416, 16
    %vm422 = vc.u32 %v414, %v418
    %v423 = vsel %vm422, 1, 0
    %v424 = vadd.s32 %v414, %v418
    %v425 = vadd.s32 %v417, %v423
    %vm426 = vc.u32 %v424, %v420
    %v427 = vsel %vm426, 1, 0
    %v428 = vadd.s32 %v424, %v420
    %v429 = vadd.s32 %v425, %v427
    %v430 = vadd.s32 %v429, %v419
    %v431 = vadd.s32 %v430, %v421
    %v432 = vmul.u32 %v387, %v378
    %v433 = vadd.s32 %v409, %v428
    %vm434 = vc.u32 %v409, %v428
    %v435 = vadd.s32 %v431, 1
    %v436 = vsel %vm434, %v435, %v431
    %v437 = vadd.s32 %v432, %v436
    %v438 = vadd.s32 %v437, 536870912
    %v439 = vshrl.u32 %v438, 30
    %v440 = vshll.u32 %v439, 30
    %v441 = vsub.s32 %v437, %v440
    %vm442 = vcmp.lt.s32.totalorder %v441, 0
    %v443 = vsub.s32 0, %v441
    %v444 = vsel %vm442, %v443, %v441
    %v445 = vclz %v444
    %v446 = vsub.s32 %v445, 2
    %vm447 = vcmp.gt.s32.totalorder 0, %v446
    %v448 = vsel %vm447, 0, %v446
    %v449 = vsub.s32 32, %v448
    %v450 = vshll.u32 %v441, %v448
    %v451 = vshrl.u32 %v433, %v449
    %v452 = vor.u32 %v450, %v451
    %v453 = vsub.s32 4294967266, %v448
    %v454 = vadd.s32 %v453, 127
    %v455 = vshll.u32 %v454, 23
    %v456 = vor.u32 4788187, %v455
    %v457 = vand.u32 2147483647, %v456
    %v459 = vcvt.s32.f32 %v452
    %v460 = vmul.f32 %v459, %v457
    %v461 = vxor.u32 %v460, 2147483648
    %v462 = vsel %vm341, %v461, %v460
    %v463 = vsub.s32 4, %v439
    %v464 = vsel %vm341, %v463, %v439
    %v465 = vsel %vm340, %v338, %v462
    %v466 = vsel %vm340, 0, %v464
    %v467 = vmul.f32 %v465, %v465
    %v468 = vmul.f32 %v467, -0.001358992
    %v469 = vadd.f32 %v468, 0.041655596
    %v470 = vmul.f32 %v467, %v469
    %v471 = vadd.f32 %v470, -0.4999988
    %v472 = vmul.f32 %v467, %v471
    %v473 = vadd.f32 1.0, %v472
    %v474 = vmul.f32 %v465, %v465
    %v475 = vmul.f32 %v474, -0.00019511016
    %v476 = vadd.f32 %v475, 0.008332121
    %v477 = vmul.f32 %v474, %v476
    %v478 = vadd.f32 %v477, -0.16666654
    %v479 = vmul.f32 %v474, %v478
    %v480 = vadd.f32 %v479, 1.0
    %v481 = vmul.f32 %v480, %v465
    %vm482 = vweird.f32 %v338
    %v483 = vadd.s32 %v466, 3
    %v484 = vand.u32 %v483, 3
    %vm485 = vcmp.lt.s32.totalorder %v484, 2
    %vm486 = vcmp.eq.s32.totalorder %v484, 0
    %v487 = vxor.u32 %v481, 2147483648
    %v488 = vsel %vm486, %v473, %v487
    %vm489 = vcmp.eq.s32.totalorder %v484, 2
    %v490 = vxor.u32 %v473, 2147483648
    %v491 = vsel %vm489, %v490, %v481
    %v492 = vsel %vm485, %v488, %v491
    %v493 = vsel %vm482, nan, %v492
    %s494 = scalar_lea.vmem [#allocation5], 24
    %495 = vst [vmem:[%s494] sm:$0xff] %v493
    %v496 = vand.u32 2147483647, %v338
    %vm497 = vcmp.le.f32.partialorder %v496, 0.7853982
    %vm498 = vcmp.lt.s32.totalorder %v338, 0
    %v499 = vand.u32 %v338, 2139095040
    %v500 = vshrl.u32 %v499, 23
    %v501 = vsub.s32 %v500, 127
    %v502 = vand.u32 2147483647, %v338
    %v503 = vand.u32 %v502, 8388607
    %v504 = vor.u32 %v503, 8388608
    %v505 = vsub.s32 0, %v504
    %v506 = vadd.s32 %v501, 1
    %vm507 = vcmp.gt.s32.totalorder %v506, 0
    %v508 = vsel %vm507, %v506, 0
    %v509 = vshrl.u32 %v508, 5
    %v510 = vand.u32 %v508, 31
    %v511 = vsub.s32 32, %v510
    %v512 = vshrl.u32 683565275, %v511
    %v513 = vshll.u32 683565275, %v510
    %v514 = vshrl.u32 2475754826, %v511
    %v515 = vor.u32 %v513, %v514
    %v516 = vshll.u32 2475754826, %v510
    %v517 = vshrl.u32 2131351028, %v511
    %v518 = vor.u32 %v516, %v517
    %v519 = vshll.u32 2131351028, %v510
    %v520 = vshrl.u32 2102212464, %v511
    %v521 = vor.u32 %v519, %v520
    %v522 = vshll.u32 2102212464, %v510
    %v523 = vshrl.u32 920167782, %v511
    %v524 = vor.u32 %v522, %v523
    %v525 = vshll.u32 920167782, %v510
    %v526 = vshrl.u32 1326507024, %v511
    %v527 = vor.u32 %v525, %v526
    %vm528 = vcmp.lt.s32.totalorder %v509, 1
    %vm529 = vcmp.lt.s32.totalorder %v509, 2
    %vm530 = vcmp.lt.s32.totalorder %v509, 3
    %vm531 = vcmp.lt.s32.totalorder %v509, 4
    %v532 = vsel %vm528, %v512, %v515
    %v533 = vsel %vm531, %v521, 2102212464
    %v534 = vsel %vm530, %v518, %v533
    %v535 = vsel %vm529, %v532, %v534
    %v536 = vsel %vm528, %v515, %v518
    %v537 = vsel %vm531, %v524, 920167782
    %v538 = vsel %vm530, %v521, %v537
    %v539 = vsel %vm529, %v536, %v538
    %v540 = vsel %vm528, %v518, %v521
    %v541 = vsel %vm531, %v527, 1326507024
    %v542 = vsel %vm530, %v524, %v541
    %v543 = vsel %vm529, %v540, %v542
    %v544 = vshll.u32 %v504, 8
    %v545 = vand.u32 %v544, 65535
    %v546 = vshrl.u32 %v544, 16
    %v547 = vand.u32 %v543, 65535
    %v548 = vshrl.u32 %v543, 16
    %v549 = vmul.u32 %v545, %v547
    %v550 = vmul.u32 %v545, %v548
    %v551 = vmul.u32 %v546, %v547
    %v552 = vmul.u32 %v546, %v548
    %v553 = vshll.u32 %v550, 16
    %v554 = vshrl.u32 %v550, 16
    %v555 = vshll.u32 %v551, 16
    %v556 = vshrl.u32 %v551, 16
    %vm557 = vc.u32 %v549, %v553
    %v558 = vsel %vm557, 1, 0
    %v559 = vadd.s32 %v549, %v553
    %v560 = vadd.s32 %v552, %v558
    %vm561 = vc.u32 %v559, %v555
    %v562 = vsel %vm561, 1, 0
    %v563 = vadd.s32 %v559, %v555
    %v564 = vadd.s32 %v560, %v562
    %v565 = vadd.s32 %v564, %v554
    %v566 = vadd.s32 %v565, %v556
    %v567 = vand.u32 %v544, 65535
    %v568 = vshrl.u32 %v544, 16
    %v569 = vand.u32 %v539, 65535
    %v570 = vshrl.u32 %v539, 16
    %v571 = vmul.u32 %v567, %v569
    %v572 = vmul.u32 %v567, %v570
    %v573 = vmul.u32 %v568, %v569
    %v574 = vmul.u32 %v568, %v570
    %v575 = vshll.u32 %v572, 16
    %v576 = vshrl.u32 %v572, 16
    %v577 = vshll.u32 %v573, 16
    %v578 = vshrl.u32 %v573, 16
    %vm579 = vc.u32 %v571, %v575
    %v580 = vsel %vm579, 1, 0
    %v581 = vadd.s32 %v571, %v575
    %v582 = vadd.s32 %v574, %v580
    %vm583 = vc.u32 %v581, %v577
    %v584 = vsel %vm583, 1, 0
    %v585 = vadd.s32 %v581, %v577
    %v586 = vadd.s32 %v582, %v584
    %v587 = vadd.s32 %v586, %v576
    %v588 = vadd.s32 %v587, %v578
    %v589 = vmul.u32 %v544, %v535
    %v590 = vadd.s32 %v566, %v585
    %vm591 = vc.u32 %v566, %v585
    %v592 = vadd.s32 %v588, 1
    %v593 = vsel %vm591, %v592, %v588
    %v594 = vadd.s32 %v589, %v593
    %v595 = vadd.s32 %v594, 536870912
    %v596 = vshrl.u32 %v595, 30
    %v597 = vshll.u32 %v596, 30
    %v598 = vsub.s32 %v594, %v597
    %vm599 = vcmp.lt.s32.totalorder %v598, 0
    %v600 = vsub.s32 0, %v598
    %v601 = vsel %vm599, %v600, %v598
    %v602 = vclz %v601
    %v603 = vsub.s32 %v602, 2
    %vm604 = vcmp.gt.s32.totalorder 0, %v603
    %v605 = vsel %vm604, 0, %v603
    %v606 = vsub.s32 32, %v605
    %v607 = vshll.u32 %v598, %v605
    %v608 = vshrl.u32 %v590, %v606
    %v609 = vor.u32 %v607, %v608
    %v610 = vsub.s32 4294967266, %v605
    %v611 = vadd.s32 %v610, 127
    %v612 = vshll.u32 %v611, 23
    %v613 = vor.u32 4788187, %v612
    %v614 = vand.u32 2147483647, %v613
    %v616 = vcvt.s32.f32 %v609
    %v617 = vmul.f32 %v616, %v614
    %v618 = vxor.u32 %v617, 2147483648
    %v619 = vsel %vm498, %v618, %v617
    %v620 = vsub.s32 4, %v596
    %v621 = vsel %vm498, %v620, %v596
    %v622 = vsel %vm497, %v338, %v619
    %v623 = vsel %vm497, 0, %v621
    %v624 = vmul.f32 %v622, %v622
    %v625 = vmul.f32 %v624, -0.001358992
    %v626 = vadd.f32 %v625, 0.041655596
    %v627 = vmul.f32 %v624, %v626
    %v628 = vadd.f32 %v627, -0.4999988
    %v629 = vmul.f32 %v624, %v628
    %v630 = vadd.f32 1.0, %v629
    %v631 = vmul.f32 %v622, %v622
    %v632 = vmul.f32 %v631, -0.00019511016
    %v633 = vadd.f32 %v632, 0.008332121
    %v634 = vmul.f32 %v631, %v633
    %v635 = vadd.f32 %v634, -0.16666654
    %v636 = vmul.f32 %v631, %v635
    %v637 = vadd.f32 %v636, 1.0
    %v638 = vmul.f32 %v637, %v622
    %vm639 = vweird.f32 %v338
    %v640 = vand.u32 %v623, 3
    %vm641 = vcmp.lt.s32.totalorder %v640, 2
    %vm642 = vcmp.eq.s32.totalorder %v640, 0
    %v643 = vxor.u32 %v638, 2147483648
    %v644 = vsel %vm642, %v630, %v643
    %vm645 = vcmp.eq.s32.totalorder %v640, 2
    %v646 = vxor.u32 %v630, 2147483648
    %v647 = vsel %vm645, %v646, %v638
    %v648 = vsel %vm641, %v644, %v647
    %v649 = vsel %vm639, nan, %v648
    %s650 = scalar_lea.vmem [#allocation5], 32
    %651 = vst [vmem:[%s650] sm:$0xff] %v649
    %v652 = vmul.f32 %v23, 13.4
    %v653 = vand.u32 2147483647, %v652
    %vm654 = vcmp.le.f32.partialorder %v653, 0.7853982
    %vm655 = vcmp.lt.s32.totalorder %v652, 0
    %v656 = vand.u32 %v652, 2139095040
    %v657 = vshrl.u32 %v656, 23
    %v658 = vsub.s32 %v657, 127
    %v659 = vand.u32 2147483647, %v652
    %v660 = vand.u32 %v659, 8388607
    %v661 = vor.u32 %v660, 8388608
    %v662 = vsub.s32 0, %v661
    %v663 = vadd.s32 %v658, 1
    %vm664 = vcmp.gt.s32.totalorder %v663, 0
    %v665 = vsel %vm664, %v663, 0
    %v666 = vshrl.u32 %v665, 5
    %v667 = vand.u32 %v665, 31
    %v668 = vsub.s32 32, %v667
    %v669 = vshrl.u32 683565275, %v668
    %v670 = vshll.u32 683565275, %v667
    %v671 = vshrl.u32 2475754826, %v668
    %v672 = vor.u32 %v670, %v671
    %v673 = vshll.u32 2475754826, %v667
    %v674 = vshrl.u32 2131351028, %v668
    %v675 = vor.u32 %v673, %v674
    %v676 = vshll.u32 2131351028, %v667
    %v677 = vshrl.u32 2102212464, %v668
    %v678 = vor.u32 %v676, %v677
    %v679 = vshll.u32 2102212464, %v667
    %v680 = vshrl.u32 920167782, %v668
    %v681 = vor.u32 %v679, %v680
    %v682 = vshll.u32 920167782, %v667
    %v683 = vshrl.u32 1326507024, %v668
    %v684 = vor.u32 %v682, %v683
    %vm685 = vcmp.lt.s32.totalorder %v666, 1
    %vm686 = vcmp.lt.s32.totalorder %v666, 2
    %vm687 = vcmp.lt.s32.totalorder %v666, 3
    %vm688 = vcmp.lt.s32.totalorder %v666, 4
    %v689 = vsel %vm685, %v669, %v672
    %v690 = vsel %vm688, %v678, 2102212464
    %v691 = vsel %vm687, %v675, %v690
    %v692 = vsel %vm686, %v689, %v691
    %v693 = vsel %vm685, %v672, %v675
    %v694 = vsel %vm688, %v681, 920167782
    %v695 = vsel %vm687, %v678, %v694
    %v696 = vsel %vm686, %v693, %v695
    %v697 = vsel %vm685, %v675, %v678
    %v698 = vsel %vm688, %v684, 1326507024
    %v699 = vsel %vm687, %v681, %v698
    %v700 = vsel %vm686, %v697, %v699
    %v701 = vshll.u32 %v661, 8
    %v702 = vand.u32 %v701, 65535
    %v703 = vshrl.u32 %v701, 16
    %v704 = vand.u32 %v700, 65535
    %v705 = vshrl.u32 %v700, 16
    %v706 = vmul.u32 %v702, %v704
    %v707 = vmul.u32 %v702, %v705
    %v708 = vmul.u32 %v703, %v704
    %v709 = vmul.u32 %v703, %v705
    %v710 = vshll.u32 %v707, 16
    %v711 = vshrl.u32 %v707, 16
    %v712 = vshll.u32 %v708, 16
    %v713 = vshrl.u32 %v708, 16
    %vm714 = vc.u32 %v706, %v710
    %v715 = vsel %vm714, 1, 0
    %v716 = vadd.s32 %v706, %v710
    %v717 = vadd.s32 %v709, %v715
    %vm718 = vc.u32 %v716, %v712
    %v719 = vsel %vm718, 1, 0
    %v720 = vadd.s32 %v716, %v712
    %v721 = vadd.s32 %v717, %v719
    %v722 = vadd.s32 %v721, %v711
    %v723 = vadd.s32 %v722, %v713
    %v724 = vand.u32 %v701, 65535
    %v725 = vshrl.u32 %v701, 16
    %v726 = vand.u32 %v696, 65535
    %v727 = vshrl.u32 %v696, 16
    %v728 = vmul.u32 %v724, %v726
    %v729 = vmul.u32 %v724, %v727
    %v730 = vmul.u32 %v725, %v726
    %v731 = vmul.u32 %v725, %v727
    %v732 = vshll.u32 %v729, 16
    %v733 = vshrl.u32 %v729, 16
    %v734 = vshll.u32 %v730, 16
    %v735 = vshrl.u32 %v730, 16
    %vm736 = vc.u32 %v728, %v732
    %v737 = vsel %vm736, 1, 0
    %v738 = vadd.s32 %v728, %v732
    %v739 = vadd.s32 %v731, %v737
    %vm740 = vc.u32 %v738, %v734
    %v741 = vsel %vm740, 1, 0
    %v742 = vadd.s32 %v738, %v734
    %v743 = vadd.s32 %v739, %v741
    %v744 = vadd.s32 %v743, %v733
    %v745 = vadd.s32 %v744, %v735
    %v746 = vmul.u32 %v701, %v692
    %v747 = vadd.s32 %v723, %v742
    %vm748 = vc.u32 %v723, %v742
    %v749 = vadd.s32 %v745, 1
    %v750 = vsel %vm748, %v749, %v745
    %v751 = vadd.s32 %v746, %v750
    %v752 = vadd.s32 %v751, 536870912
    %v753 = vshrl.u32 %v752, 30
    %v754 = vshll.u32 %v753, 30
    %v755 = vsub.s32 %v751, %v754
    %vm756 = vcmp.lt.s32.totalorder %v755, 0
    %v757 = vsub.s32 0, %v755
    %v758 = vsel %vm756, %v757, %v755
    %v759 = vclz %v758
    %v760 = vsub.s32 %v759, 2
    %vm761 = vcmp.gt.s32.totalorder 0, %v760
    %v762 = vsel %vm761, 0, %v760
    %v763 = vsub.s32 32, %v762
    %v764 = vshll.u32 %v755, %v762
    %v765 = vshrl.u32 %v747, %v763
    %v766 = vor.u32 %v764, %v765
    %v767 = vsub.s32 4294967266, %v762
    %v768 = vadd.s32 %v767, 127
    %v769 = vshll.u32 %v768, 23
    %v770 = vor.u32 4788187, %v769
    %v771 = vand.u32 2147483647, %v770
    %v773 = vcvt.s32.f32 %v766
    %v774 = vmul.f32 %v773, %v771
    %v775 = vxor.u32 %v774, 2147483648
    %v776 = vsel %vm655, %v775, %v774
    %v777 = vsub.s32 4, %v753
    %v778 = vsel %vm655, %v777, %v753
    %v779 = vsel %vm654, %v652, %v776
    %v780 = vsel %vm654, 0, %v778
    %v781 = vmul.f32 %v779, %v779
    %v782 = vmul.f32 %v781, -0.001358992
    %v783 = vadd.f32 %v782, 0.041655596
    %v784 = vmul.f32 %v781, %v783
    %v785 = vadd.f32 %v784, -0.4999988
    %v786 = vmul.f32 %v781, %v785
    %v787 = vadd.f32 1.0, %v786
    %v788 = vmul.f32 %v779, %v779
    %v789 = vmul.f32 %v788, -0.00019511016
    %v790 = vadd.f32 %v789, 0.008332121
    %v791 = vmul.f32 %v788, %v790
    %v792 = vadd.f32 %v791, -0.16666654
    %v793 = vmul.f32 %v788, %v792
    %v794 = vadd.f32 %v793, 1.0
    %v795 = vmul.f32 %v794, %v779
    %vm796 = vweird.f32 %v652
    %v797 = vadd.s32 %v780, 3
    %v798 = vand.u32 %v797, 3
    %vm799 = vcmp.lt.s32.totalorder %v798, 2
    %vm800 = vcmp.eq.s32.totalorder %v798, 0
    %v801 = vxor.u32 %v795, 2147483648
    %v802 = vsel %vm800, %v787, %v801
    %vm803 = vcmp.eq.s32.totalorder %v798, 2
    %v804 = vxor.u32 %v787, 2147483648
    %v805 = vsel %vm803, %v804, %v795
    %v806 = vsel %vm799, %v802, %v805
    %v807 = vsel %vm796, nan, %v806
    %s808 = scalar_lea.vmem [#allocation5], 40
    %809 = vst [vmem:[%s808] sm:$0xff] %v807
    %v810 = vand.u32 2147483647, %v652
    %vm811 = vcmp.le.f32.partialorder %v810, 0.7853982
    %vm812 = vcmp.lt.s32.totalorder %v652, 0
    %v813 = vand.u32 %v652, 2139095040
    %v814 = vshrl.u32 %v813, 23
    %v815 = vsub.s32 %v814, 127
    %v816 = vand.u32 2147483647, %v652
    %v817 = vand.u32 %v816, 8388607
    %v818 = vor.u32 %v817, 8388608
    %v819 = vsub.s32 0, %v818
    %v820 = vadd.s32 %v815, 1
    %vm821 = vcmp.gt.s32.totalorder %v820, 0
    %v822 = vsel %vm821, %v820, 0
    %v823 = vshrl.u32 %v822, 5
    %v824 = vand.u32 %v822, 31
    %v825 = vsub.s32 32, %v824
    %v826 = vshrl.u32 683565275, %v825
    %v827 = vshll.u32 683565275, %v824
    %v828 = vshrl.u32 2475754826, %v825
    %v829 = vor.u32 %v827, %v828
    %v830 = vshll.u32 2475754826, %v824
    %v831 = vshrl.u32 2131351028, %v825
    %v832 = vor.u32 %v830, %v831
    %v833 = vshll.u32 2131351028, %v824
    %v834 = vshrl.u32 2102212464, %v825
    %v835 = vor.u32 %v833, %v834
    %v836 = vshll.u32 2102212464, %v824
    %v837 = vshrl.u32 920167782, %v825
    %v838 = vor.u32 %v836, %v837
    %v839 = vshll.u32 920167782, %v824
    %v840 = vshrl.u32 1326507024, %v825
    %v841 = vor.u32 %v839, %v840
    %vm842 = vcmp.lt.s32.totalorder %v823, 1
    %vm843 = vcmp.lt.s32.totalorder %v823, 2
    %vm844 = vcmp.lt.s32.totalorder %v823, 3
    %vm845 = vcmp.lt.s32.totalorder %v823, 4
    %v846 = vsel %vm842, %v826, %v829
    %v847 = vsel %vm845, %v835, 2102212464
    %v848 = vsel %vm844, %v832, %v847
    %v849 = vsel %vm843, %v846, %v848
    %v850 = vsel %vm842, %v829, %v832
    %v851 = vsel %vm845, %v838, 920167782
    %v852 = vsel %vm844, %v835, %v851
    %v853 = vsel %vm843, %v850, %v852
    %v854 = vsel %vm842, %v832, %v835
    %v855 = vsel %vm845, %v841, 1326507024
    %v856 = vsel %vm844, %v838, %v855
    %v857 = vsel %vm843, %v854, %v856
    %v858 = vshll.u32 %v818, 8
    %v859 = vand.u32 %v858, 65535
    %v860 = vshrl.u32 %v858, 16
    %v861 = vand.u32 %v857, 65535
    %v862 = vshrl.u32 %v857, 16
    %v863 = vmul.u32 %v859, %v861
    %v864 = vmul.u32 %v859, %v862
    %v865 = vmul.u32 %v860, %v861
    %v866 = vmul.u32 %v860, %v862
    %v867 = vshll.u32 %v864, 16
    %v868 = vshrl.u32 %v864, 16
    %v869 = vshll.u32 %v865, 16
    %v870 = vshrl.u32 %v865, 16
    %vm871 = vc.u32 %v863, %v867
    %v872 = vsel %vm871, 1, 0
    %v873 = vadd.s32 %v863, %v867
    %v874 = vadd.s32 %v866, %v872
    %vm875 = vc.u32 %v873, %v869
    %v876 = vsel %vm875, 1, 0
    %v877 = vadd.s32 %v873, %v869
    %v878 = vadd.s32 %v874, %v876
    %v879 = vadd.s32 %v878, %v868
    %v880 = vadd.s32 %v879, %v870
    %v881 = vand.u32 %v858, 65535
    %v882 = vshrl.u32 %v858, 16
    %v883 = vand.u32 %v853, 65535
    %v884 = vshrl.u32 %v853, 16
    %v885 = vmul.u32 %v881, %v883
    %v886 = vmul.u32 %v881, %v884
    %v887 = vmul.u32 %v882, %v883
    %v888 = vmul.u32 %v882, %v884
    %v889 = vshll.u32 %v886, 16
    %v890 = vshrl.u32 %v886, 16
    %v891 = vshll.u32 %v887, 16
    %v892 = vshrl.u32 %v887, 16
    %vm893 = vc.u32 %v885, %v889
    %v894 = vsel %vm893, 1, 0
    %v895 = vadd.s32 %v885, %v889
    %v896 = vadd.s32 %v888, %v894
    %vm897 = vc.u32 %v895, %v891
    %v898 = vsel %vm897, 1, 0
    %v899 = vadd.s32 %v895, %v891
    %v900 = vadd.s32 %v896, %v898
    %v901 = vadd.s32 %v900, %v890
    %v902 = vadd.s32 %v901, %v892
    %v903 = vmul.u32 %v858, %v849
    %v904 = vadd.s32 %v880, %v899
    %vm905 = vc.u32 %v880, %v899
    %v906 = vadd.s32 %v902, 1
    %v907 = vsel %vm905, %v906, %v902
    %v908 = vadd.s32 %v903, %v907
    %v909 = vadd.s32 %v908, 536870912
    %v910 = vshrl.u32 %v909, 30
    %v911 = vshll.u32 %v910, 30
    %v912 = vsub.s32 %v908, %v911
    %vm913 = vcmp.lt.s32.totalorder %v912, 0
    %v914 = vsub.s32 0, %v912
    %v915 = vsel %vm913, %v914, %v912
    %v916 = vclz %v915
    %v917 = vsub.s32 %v916, 2
    %vm918 = vcmp.gt.s32.totalorder 0, %v917
    %v919 = vsel %vm918, 0, %v917
    %v920 = vsub.s32 32, %v919
    %v921 = vshll.u32 %v912, %v919
    %v922 = vshrl.u32 %v904, %v920
    %v923 = vor.u32 %v921, %v922
    %v924 = vsub.s32 4294967266, %v919
    %v925 = vadd.s32 %v924, 127
    %v926 = vshll.u32 %v925, 23
    %v927 = vor.u32 4788187, %v926
    %v928 = vand.u32 2147483647, %v927
    %v930 = vcvt.s32.f32 %v923
    %v931 = vmul.f32 %v930, %v928
    %v932 = vxor.u32 %v931, 2147483648
    %v933 = vsel %vm812, %v932, %v931
    %v934 = vsub.s32 4, %v910
    %v935 = vsel %vm812, %v934, %v910
    %v936 = vsel %vm811, %v652, %v933
    %v937 = vsel %vm811, 0, %v935
    %v938 = vmul.f32 %v936, %v936
    %v939 = vmul.f32 %v938, -0.001358992
    %v940 = vadd.f32 %v939, 0.041655596
    %v941 = vmul.f32 %v938, %v940
    %v942 = vadd.f32 %v941, -0.4999988
    %v943 = vmul.f32 %v938, %v942
    %v944 = vadd.f32 1.0, %v943
    %v945 = vmul.f32 %v936, %v936
    %v946 = vmul.f32 %v945, -0.00019511016
    %v947 = vadd.f32 %v946, 0.008332121
    %v948 = vmul.f32 %v945, %v947
    %v949 = vadd.f32 %v948, -0.16666654
    %v950 = vmul.f32 %v945, %v949
    %v951 = vadd.f32 %v950, 1.0
    %v952 = vmul.f32 %v951, %v936
    %vm953 = vweird.f32 %v652
    %v954 = vand.u32 %v937, 3
    %vm955 = vcmp.lt.s32.totalorder %v954, 2
    %vm956 = vcmp.eq.s32.totalorder %v954, 0
    %v957 = vxor.u32 %v952, 2147483648
    %v958 = vsel %vm956, %v944, %v957
    %vm959 = vcmp.eq.s32.totalorder %v954, 2
    %v960 = vxor.u32 %v944, 2147483648
    %v961 = vsel %vm959, %v960, %v952
    %v962 = vsel %vm955, %v958, %v961
    %v963 = vsel %vm953, nan, %v962
    %s964 = scalar_lea.vmem [#allocation5], 48
    %965 = vst [vmem:[%s964] sm:$0xff] %v963
    %v966 = vmul.f32 %v23, 19.6
    %v967 = vand.u32 2147483647, %v966
    %vm968 = vcmp.le.f32.partialorder %v967, 0.7853982
    %vm969 = vcmp.lt.s32.totalorder %v966, 0
    %v970 = vand.u32 %v966, 2139095040
    %v971 = vshrl.u32 %v970, 23
    %v972 = vsub.s32 %v971, 127
    %v973 = vand.u32 2147483647, %v966
    %v974 = vand.u32 %v973, 8388607
    %v975 = vor.u32 %v974, 8388608
    %v976 = vsub.s32 0, %v975
    %v977 = vadd.s32 %v972, 1
    %vm978 = vcmp.gt.s32.totalorder %v977, 0
    %v979 = vsel %vm978, %v977, 0
    %v980 = vshrl.u32 %v979, 5
    %v981 = vand.u32 %v979, 31
    %v982 = vsub.s32 32, %v981
    %v983 = vshrl.u32 683565275, %v982
    %v984 = vshll.u32 683565275, %v981
    %v985 = vshrl.u32 2475754826, %v982
    %v986 = vor.u32 %v984, %v985
    %v987 = vshll.u32 2475754826, %v981
    %v988 = vshrl.u32 2131351028, %v982
    %v989 = vor.u32 %v987, %v988
    %v990 = vshll.u32 2131351028, %v981
    %v991 = vshrl.u32 2102212464, %v982
    %v992 = vor.u32 %v990, %v991
    %v993 = vshll.u32 2102212464, %v981
    %v994 = vshrl.u32 920167782, %v982
    %v995 = vor.u32 %v993, %v994
    %v996 = vshll.u32 920167782, %v981
    %v997 = vshrl.u32 1326507024, %v982
    %v998 = vor.u32 %v996, %v997
    %vm999 = vcmp.lt.s32.totalorder %v980, 1
    %vm1000 = vcmp.lt.s32.totalorder %v980, 2
    %vm1001 = vcmp.lt.s32.totalorder %v980, 3
    %vm1002 = vcmp.lt.s32.totalorder %v980, 4
    %v1003 = vsel %vm999, %v983, %v986
    %v1004 = vsel %vm1002, %v992, 2102212464
    %v1005 = vsel %vm1001, %v989, %v1004
    %v1006 = vsel %vm1000, %v1003, %v1005
    %v1007 = vsel %vm999, %v986, %v989
    %v1008 = vsel %vm1002, %v995, 920167782
    %v1009 = vsel %vm1001, %v992, %v1008
    %v1010 = vsel %vm1000, %v1007, %v1009
    %v1011 = vsel %vm999, %v989, %v992
    %v1012 = vsel %vm1002, %v998, 1326507024
    %v1013 = vsel %vm1001, %v995, %v1012
    %v1014 = vsel %vm1000, %v1011, %v1013
    %v1015 = vshll.u32 %v975, 8
    %v1016 = vand.u32 %v1015, 65535
    %v1017 = vshrl.u32 %v1015, 16
    %v1018 = vand.u32 %v1014, 65535
    %v1019 = vshrl.u32 %v1014, 16
    %v1020 = vmul.u32 %v1016, %v1018
    %v1021 = vmul.u32 %v1016, %v1019
    %v1022 = vmul.u32 %v1017, %v1018
    %v1023 = vmul.u32 %v1017, %v1019
    %v1024 = vshll.u32 %v1021, 16
    %v1025 = vshrl.u32 %v1021, 16
    %v1026 = vshll.u32 %v1022, 16
    %v1027 = vshrl.u32 %v1022, 16
    %vm1028 = vc.u32 %v1020, %v1024
    %v1029 = vsel %vm1028, 1, 0
    %v1030 = vadd.s32 %v1020, %v1024
    %v1031 = vadd.s32 %v1023, %v1029
    %vm1032 = vc.u32 %v1030, %v1026
    %v1033 = vsel %vm1032, 1, 0
    %v1034 = vadd.s32 %v1030, %v1026
    %v1035 = vadd.s32 %v1031, %v1033
    %v1036 = vadd.s32 %v1035, %v1025
    %v1037 = vadd.s32 %v1036, %v1027
    %v1038 = vand.u32 %v1015, 65535
    %v1039 = vshrl.u32 %v1015, 16
    %v1040 = vand.u32 %v1010, 65535
    %v1041 = vshrl.u32 %v1010, 16
    %v1042 = vmul.u32 %v1038, %v1040
    %v1043 = vmul.u32 %v1038, %v1041
    %v1044 = vmul.u32 %v1039, %v1040
    %v1045 = vmul.u32 %v1039, %v1041
    %v1046 = vshll.u32 %v1043, 16
    %v1047 = vshrl.u32 %v1043, 16
    %v1048 = vshll.u32 %v1044, 16
    %v1049 = vshrl.u32 %v1044, 16
    %vm1050 = vc.u32 %v1042, %v1046
    %v1051 = vsel %vm1050, 1, 0
    %v1052 = vadd.s32 %v1042, %v1046
    %v1053 = vadd.s32 %v1045, %v1051
    %vm1054 = vc.u32 %v1052, %v1048
    %v1055 = vsel %vm1054, 1, 0
    %v1056 = vadd.s32 %v1052, %v1048
    %v1057 = vadd.s32 %v1053, %v1055
    %v1058 = vadd.s32 %v1057, %v1047
    %v1059 = vadd.s32 %v1058, %v1049
    %v1060 = vmul.u32 %v1015, %v1006
    %v1061 = vadd.s32 %v1037, %v1056
    %vm1062 = vc.u32 %v1037, %v1056
    %v1063 = vadd.s32 %v1059, 1
    %v1064 = vsel %vm1062, %v1063, %v1059
    %v1065 = vadd.s32 %v1060, %v1064
    %v1066 = vadd.s32 %v1065, 536870912
    %v1067 = vshrl.u32 %v1066, 30
    %v1068 = vshll.u32 %v1067, 30
    %v1069 = vsub.s32 %v1065, %v1068
    %vm1070 = vcmp.lt.s32.totalorder %v1069, 0
    %v1071 = vsub.s32 0, %v1069
    %v1072 = vsel %vm1070, %v1071, %v1069
    %v1073 = vclz %v1072
    %v1074 = vsub.s32 %v1073, 2
    %vm1075 = vcmp.gt.s32.totalorder 0, %v1074
    %v1076 = vsel %vm1075, 0, %v1074
    %v1077 = vsub.s32 32, %v1076
    %v1078 = vshll.u32 %v1069, %v1076
    %v1079 = vshrl.u32 %v1061, %v1077
    %v1080 = vor.u32 %v1078, %v1079
    %v1081 = vsub.s32 4294967266, %v1076
    %v1082 = vadd.s32 %v1081, 127
    %v1083 = vshll.u32 %v1082, 23
    %v1084 = vor.u32 4788187, %v1083
    %v1085 = vand.u32 2147483647, %v1084
    %v1087 = vcvt.s32.f32 %v1080
    %v1088 = vmul.f32 %v1087, %v1085
    %v1089 = vxor.u32 %v1088, 2147483648
    %v1090 = vsel %vm969, %v1089, %v1088
    %v1091 = vsub.s32 4, %v1067
    %v1092 = vsel %vm969, %v1091, %v1067
    %v1093 = vsel %vm968, %v966, %v1090
    %v1094 = vsel %vm968, 0, %v1092
    %v1095 = vmul.f32 %v1093, %v1093
    %v1096 = vmul.f32 %v1095, -0.001358992
    %v1097 = vadd.f32 %v1096, 0.041655596
    %v1098 = vmul.f32 %v1095, %v1097
    %v1099 = vadd.f32 %v1098, -0.4999988
    %v1100 = vmul.f32 %v1095, %v1099
    %v1101 = vadd.f32 1.0, %v1100
    %v1102 = vmul.f32 %v1093, %v1093
    %v1103 = vmul.f32 %v1102, -0.00019511016
    %v1104 = vadd.f32 %v1103, 0.008332121
    %v1105 = vmul.f32 %v1102, %v1104
    %v1106 = vadd.f32 %v1105, -0.16666654
    %v1107 = vmul.f32 %v1102, %v1106
    %v1108 = vadd.f32 %v1107, 1.0
    %v1109 = vmul.f32 %v1108, %v1093
    %vm1110 = vweird.f32 %v966
    %v1111 = vadd.s32 %v1094, 3
    %v1112 = vand.u32 %v1111, 3
    %vm1113 = vcmp.lt.s32.totalorder %v1112, 2
    %vm1114 = vcmp.eq.s32.totalorder %v1112, 0
    %v1115 = vxor.u32 %v1109, 2147483648
    %v1116 = vsel %vm1114, %v1101, %v1115
    %vm1117 = vcmp.eq.s32.totalorder %v1112, 2
    %v1118 = vxor.u32 %v1101, 2147483648
    %v1119 = vsel %vm1117, %v1118, %v1109
    %v1120 = vsel %vm1113, %v1116, %v1119
    %v1121 = vsel %vm1110, nan, %v1120
    %s1122 = scalar_lea.vmem [#allocation5], 56
    %1123 = vst [vmem:[%s1122] sm:$0xff] %v1121
    %v1124 = vand.u32 2147483647, %v966
    %vm1125 = vcmp.le.f32.partialorder %v1124, 0.7853982
    %vm1126 = vcmp.lt.s32.totalorder %v966, 0
    %v1127 = vand.u32 %v966, 2139095040
    %v1128 = vshrl.u32 %v1127, 23
    %v1129 = vsub.s32 %v1128, 127
    %v1130 = vand.u32 2147483647, %v966
    %v1131 = vand.u32 %v1130, 8388607
    %v1132 = vor.u32 %v1131, 8388608
    %v1133 = vsub.s32 0, %v1132
    %v1134 = vadd.s32 %v1129, 1
    %vm1135 = vcmp.gt.s32.totalorder %v1134, 0
    %v1136 = vsel %vm1135, %v1134, 0
    %v1137 = vshrl.u32 %v1136, 5
    %v1138 = vand.u32 %v1136, 31
    %v1139 = vsub.s32 32, %v1138
    %v1140 = vshrl.u32 683565275, %v1139
    %v1141 = vshll.u32 683565275, %v1138
    %v1142 = vshrl.u32 2475754826, %v1139
    %v1143 = vor.u32 %v1141, %v1142
    %v1144 = vshll.u32 2475754826, %v1138
    %v1145 = vshrl.u32 2131351028, %v1139
    %v1146 = vor.u32 %v1144, %v1145
    %v1147 = vshll.u32 2131351028, %v1138
    %v1148 = vshrl.u32 2102212464, %v1139
    %v1149 = vor.u32 %v1147, %v1148
    %v1150 = vshll.u32 2102212464, %v1138
    %v1151 = vshrl.u32 920167782, %v1139
    %v1152 = vor.u32 %v1150, %v1151
    %v1153 = vshll.u32 920167782, %v1138
    %v1154 = vshrl.u32 1326507024, %v1139
    %v1155 = vor.u32 %v1153, %v1154
    %vm1156 = vcmp.lt.s32.totalorder %v1137, 1
    %vm1157 = vcmp.lt.s32.totalorder %v1137, 2
    %vm1158 = vcmp.lt.s32.totalorder %v1137, 3
    %vm1159 = vcmp.lt.s32.totalorder %v1137, 4
    %v1160 = vsel %vm1156, %v1140, %v1143
    %v1161 = vsel %vm1159, %v1149, 2102212464
    %v1162 = vsel %vm1158, %v1146, %v1161
    %v1163 = vsel %vm1157, %v1160, %v1162
    %v1164 = vsel %vm1156, %v1143, %v1146
    %v1165 = vsel %vm1159, %v1152, 920167782
    %v1166 = vsel %vm1158, %v1149, %v1165
    %v1167 = vsel %vm1157, %v1164, %v1166
    %v1168 = vsel %vm1156, %v1146, %v1149
    %v1169 = vsel %vm1159, %v1155, 1326507024
    %v1170 = vsel %vm1158, %v1152, %v1169
    %v1171 = vsel %vm1157, %v1168, %v1170
    %v1172 = vshll.u32 %v1132, 8
    %v1173 = vand.u32 %v1172, 65535
    %v1174 = vshrl.u32 %v1172, 16
    %v1175 = vand.u32 %v1171, 65535
    %v1176 = vshrl.u32 %v1171, 16
    %v1177 = vmul.u32 %v1173, %v1175
    %v1178 = vmul.u32 %v1173, %v1176
    %v1179 = vmul.u32 %v1174, %v1175
    %v1180 = vmul.u32 %v1174, %v1176
    %v1181 = vshll.u32 %v1178, 16
    %v1182 = vshrl.u32 %v1178, 16
    %v1183 = vshll.u32 %v1179, 16
    %v1184 = vshrl.u32 %v1179, 16
    %vm1185 = vc.u32 %v1177, %v1181
    %v1186 = vsel %vm1185, 1, 0
    %v1187 = vadd.s32 %v1177, %v1181
    %v1188 = vadd.s32 %v1180, %v1186
    %vm1189 = vc.u32 %v1187, %v1183
    %v1190 = vsel %vm1189, 1, 0
    %v1191 = vadd.s32 %v1187, %v1183
    %v1192 = vadd.s32 %v1188, %v1190
    %v1193 = vadd.s32 %v1192, %v1182
    %v1194 = vadd.s32 %v1193, %v1184
    %v1195 = vand.u32 %v1172, 65535
    %v1196 = vshrl.u32 %v1172, 16
    %v1197 = vand.u32 %v1167, 65535
    %v1198 = vshrl.u32 %v1167, 16
    %v1199 = vmul.u32 %v1195, %v1197
    %v1200 = vmul.u32 %v1195, %v1198
    %v1201 = vmul.u32 %v1196, %v1197
    %v1202 = vmul.u32 %v1196, %v1198
    %v1203 = vshll.u32 %v1200, 16
    %v1204 = vshrl.u32 %v1200, 16
    %v1205 = vshll.u32 %v1201, 16
    %v1206 = vshrl.u32 %v1201, 16
    %vm1207 = vc.u32 %v1199, %v1203
    %v1208 = vsel %vm1207, 1, 0
    %v1209 = vadd.s32 %v1199, %v1203
    %v1210 = vadd.s32 %v1202, %v1208
    %vm1211 = vc.u32 %v1209, %v1205
    %v1212 = vsel %vm1211, 1, 0
    %v1213 = vadd.s32 %v1209, %v1205
    %v1214 = vadd.s32 %v1210, %v1212
    %v1215 = vadd.s32 %v1214, %v1204
    %v1216 = vadd.s32 %v1215, %v1206
    %v1217 = vmul.u32 %v1172, %v1163
    %v1218 = vadd.s32 %v1194, %v1213
    %vm1219 = vc.u32 %v1194, %v1213
    %v1220 = vadd.s32 %v1216, 1
    %v1221 = vsel %vm1219, %v1220, %v1216
    %v1222 = vadd.s32 %v1217, %v1221
    %v1223 = vadd.s32 %v1222, 536870912
    %v1224 = vshrl.u32 %v1223, 30
    %v1225 = vshll.u32 %v1224, 30
    %v1226 = vsub.s32 %v1222, %v1225
    %vm1227 = vcmp.lt.s32.totalorder %v1226, 0
    %v1228 = vsub.s32 0, %v1226
    %v1229 = vsel %vm1227, %v1228, %v1226
    %v1230 = vclz %v1229
    %v1231 = vsub.s32 %v1230, 2
    %vm1232 = vcmp.gt.s32.totalorder 0, %v1231
    %v1233 = vsel %vm1232, 0, %v1231
    %v1234 = vsub.s32 32, %v1233
    %v1235 = vshll.u32 %v1226, %v1233
    %v1236 = vshrl.u32 %v1218, %v1234
    %v1237 = vor.u32 %v1235, %v1236
    %v1238 = vsub.s32 4294967266, %v1233
    %v1239 = vadd.s32 %v1238, 127
    %v1240 = vshll.u32 %v1239, 23
    %v1241 = vor.u32 4788187, %v1240
    %v1242 = vand.u32 2147483647, %v1241
    %v1244 = vcvt.s32.f32 %v1237
    %v1245 = vmul.f32 %v1244, %v1242
    %v1246 = vxor.u32 %v1245, 2147483648
    %v1247 = vsel %vm1126, %v1246, %v1245
    %v1248 = vsub.s32 4, %v1224
    %v1249 = vsel %vm1126, %v1248, %v1224
    %v1250 = vsel %vm1125, %v966, %v1247
    %v1251 = vsel %vm1125, 0, %v1249
    %v1252 = vmul.f32 %v1250, %v1250
    %v1253 = vmul.f32 %v1252, -0.001358992
    %v1254 = vadd.f32 %v1253, 0.041655596
    %v1255 = vmul.f32 %v1252, %v1254
    %v1256 = vadd.f32 %v1255, -0.4999988
    %v1257 = vmul.f32 %v1252, %v1256
    %v1258 = vadd.f32 1.0, %v1257
    %v1259 = vmul.f32 %v1250, %v1250
    %v1260 = vmul.f32 %v1259, -0.00019511016
    %v1261 = vadd.f32 %v1260, 0.008332121
    %v1262 = vmul.f32 %v1259, %v1261
    %v1263 = vadd.f32 %v1262, -0.16666654
    %v1264 = vmul.f32 %v1259, %v1263
    %v1265 = vadd.f32 %v1264, 1.0
    %v1266 = vmul.f32 %v1265, %v1250
    %vm1267 = vweird.f32 %v966
    %v1268 = vand.u32 %v1251, 3
    %vm1269 = vcmp.lt.s32.totalorder %v1268, 2
    %vm1270 = vcmp.eq.s32.totalorder %v1268, 0
    %v1271 = vxor.u32 %v1266, 2147483648
    %v1272 = vsel %vm1270, %v1258, %v1271
    %vm1273 = vcmp.eq.s32.totalorder %v1268, 2
    %v1274 = vxor.u32 %v1258, 2147483648
    %v1275 = vsel %vm1273, %v1274, %v1266
    %v1276 = vsel %vm1269, %v1272, %v1275
    %v1277 = vsel %vm1267, nan, %v1276
    %s1278 = scalar_lea.vmem [#allocation5], 64
    %1279 = vst [vmem:[%s1278] sm:$0xff] %v1277
    %v1280 = vmul.f32 %v23, 25.8
    %v1281 = vand.u32 2147483647, %v1280
    %vm1282 = vcmp.le.f32.partialorder %v1281, 0.7853982
    %vm1283 = vcmp.lt.s32.totalorder %v1280, 0
    %v1284 = vand.u32 %v1280, 2139095040
    %v1285 = vshrl.u32 %v1284, 23
    %v1286 = vsub.s32 %v1285, 127
    %v1287 = vand.u32 2147483647, %v1280
    %v1288 = vand.u32 %v1287, 8388607
    %v1289 = vor.u32 %v1288, 8388608
    %v1290 = vsub.s32 0, %v1289
    %v1291 = vadd.s32 %v1286, 1
    %vm1292 = vcmp.gt.s32.totalorder %v1291, 0
    %v1293 = vsel %vm1292, %v1291, 0
    %v1294 = vshrl.u32 %v1293, 5
    %v1295 = vand.u32 %v1293, 31
    %v1296 = vsub.s32 32, %v1295
    %v1297 = vshrl.u32 683565275, %v1296
    %v1298 = vshll.u32 683565275, %v1295
    %v1299 = vshrl.u32 2475754826, %v1296
    %v1300 = vor.u32 %v1298, %v1299
    %v1301 = vshll.u32 2475754826, %v1295
    %v1302 = vshrl.u32 2131351028, %v1296
    %v1303 = vor.u32 %v1301, %v1302
    %v1304 = vshll.u32 2131351028, %v1295
    %v1305 = vshrl.u32 2102212464, %v1296
    %v1306 = vor.u32 %v1304, %v1305
    %v1307 = vshll.u32 2102212464, %v1295
    %v1308 = vshrl.u32 920167782, %v1296
    %v1309 = vor.u32 %v1307, %v1308
    %v1310 = vshll.u32 920167782, %v1295
    %v1311 = vshrl.u32 1326507024, %v1296
    %v1312 = vor.u32 %v1310, %v1311
    %vm1313 = vcmp.lt.s32.totalorder %v1294, 1
    %vm1314 = vcmp.lt.s32.totalorder %v1294, 2
    %vm1315 = vcmp.lt.s32.totalorder %v1294, 3
    %vm1316 = vcmp.lt.s32.totalorder %v1294, 4
    %v1317 = vsel %vm1313, %v1297, %v1300
    %v1318 = vsel %vm1316, %v1306, 2102212464
    %v1319 = vsel %vm1315, %v1303, %v1318
    %v1320 = vsel %vm1314, %v1317, %v1319
    %v1321 = vsel %vm1313, %v1300, %v1303
    %v1322 = vsel %vm1316, %v1309, 920167782
    %v1323 = vsel %vm1315, %v1306, %v1322
    %v1324 = vsel %vm1314, %v1321, %v1323
    %v1325 = vsel %vm1313, %v1303, %v1306
    %v1326 = vsel %vm1316, %v1312, 1326507024
    %v1327 = vsel %vm1315, %v1309, %v1326
    %v1328 = vsel %vm1314, %v1325, %v1327
    %v1329 = vshll.u32 %v1289, 8
    %v1330 = vand.u32 %v1329, 65535
    %v1331 = vshrl.u32 %v1329, 16
    %v1332 = vand.u32 %v1328, 65535
    %v1333 = vshrl.u32 %v1328, 16
    %v1334 = vmul.u32 %v1330, %v1332
    %v1335 = vmul.u32 %v1330, %v1333
    %v1336 = vmul.u32 %v1331, %v1332
    %v1337 = vmul.u32 %v1331, %v1333
    %v1338 = vshll.u32 %v1335, 16
    %v1339 = vshrl.u32 %v1335, 16
    %v1340 = vshll.u32 %v1336, 16
    %v1341 = vshrl.u32 %v1336, 16
    %vm1342 = vc.u32 %v1334, %v1338
    %v1343 = vsel %vm1342, 1, 0
    %v1344 = vadd.s32 %v1334, %v1338
    %v1345 = vadd.s32 %v1337, %v1343
    %vm1346 = vc.u32 %v1344, %v1340
    %v1347 = vsel %vm1346, 1, 0
    %v1348 = vadd.s32 %v1344, %v1340
    %v1349 = vadd.s32 %v1345, %v1347
    %v1350 = vadd.s32 %v1349, %v1339
    %v1351 = vadd.s32 %v1350, %v1341
    %v1352 = vand.u32 %v1329, 65535
    %v1353 = vshrl.u32 %v1329, 16
    %v1354 = vand.u32 %v1324, 65535
    %v1355 = vshrl.u32 %v1324, 16
    %v1356 = vmul.u32 %v1352, %v1354
    %v1357 = vmul.u32 %v1352, %v1355
    %v1358 = vmul.u32 %v1353, %v1354
    %v1359 = vmul.u32 %v1353, %v1355
    %v1360 = vshll.u32 %v1357, 16
    %v1361 = vshrl.u32 %v1357, 16
    %v1362 = vshll.u32 %v1358, 16
    %v1363 = vshrl.u32 %v1358, 16
    %vm1364 = vc.u32 %v1356, %v1360
    %v1365 = vsel %vm1364, 1, 0
    %v1366 = vadd.s32 %v1356, %v1360
    %v1367 = vadd.s32 %v1359, %v1365
    %vm1368 = vc.u32 %v1366, %v1362
    %v1369 = vsel %vm1368, 1, 0
    %v1370 = vadd.s32 %v1366, %v1362
    %v1371 = vadd.s32 %v1367, %v1369
    %v1372 = vadd.s32 %v1371, %v1361
    %v1373 = vadd.s32 %v1372, %v1363
    %v1374 = vmul.u32 %v1329, %v1320
    %v1375 = vadd.s32 %v1351, %v1370
    %vm1376 = vc.u32 %v1351, %v1370
    %v1377 = vadd.s32 %v1373, 1
    %v1378 = vsel %vm1376, %v1377, %v1373
    %v1379 = vadd.s32 %v1374, %v1378
    %v1380 = vadd.s32 %v1379, 536870912
    %v1381 = vshrl.u32 %v1380, 30
    %v1382 = vshll.u32 %v1381, 30
    %v1383 = vsub.s32 %v1379, %v1382
    %vm1384 = vcmp.lt.s32.totalorder %v1383, 0
    %v1385 = vsub.s32 0, %v1383
    %v1386 = vsel %vm1384, %v1385, %v1383
    %v1387 = vclz %v1386
    %v1388 = vsub.s32 %v1387, 2
    %vm1389 = vcmp.gt.s32.totalorder 0, %v1388
    %v1390 = vsel %vm1389, 0, %v1388
    %v1391 = vsub.s32 32, %v1390
    %v1392 = vshll.u32 %v1383, %v1390
    %v1393 = vshrl.u32 %v1375, %v1391
    %v1394 = vor.u32 %v1392, %v1393
    %v1395 = vsub.s32 4294967266, %v1390
    %v1396 = vadd.s32 %v1395, 127
    %v1397 = vshll.u32 %v1396, 23
    %v1398 = vor.u32 4788187, %v1397
    %v1399 = vand.u32 2147483647, %v1398
    %v1401 = vcvt.s32.f32 %v1394
    %v1402 = vmul.f32 %v1401, %v1399
    %v1403 = vxor.u32 %v1402, 2147483648
    %v1404 = vsel %vm1283, %v1403, %v1402
    %v1405 = vsub.s32 4, %v1381
    %v1406 = vsel %vm1283, %v1405, %v1381
    %v1407 = vsel %vm1282, %v1280, %v1404
    %v1408 = vsel %vm1282, 0, %v1406
    %v1409 = vmul.f32 %v1407, %v1407
    %v1410 = vmul.f32 %v1409, -0.001358992
    %v1411 = vadd.f32 %v1410, 0.041655596
    %v1412 = vmul.f32 %v1409, %v1411
    %v1413 = vadd.f32 %v1412, -0.4999988
    %v1414 = vmul.f32 %v1409, %v1413
    %v1415 = vadd.f32 1.0, %v1414
    %v1416 = vmul.f32 %v1407, %v1407
    %v1417 = vmul.f32 %v1416, -0.00019511016
    %v1418 = vadd.f32 %v1417, 0.008332121
    %v1419 = vmul.f32 %v1416, %v1418
    %v1420 = vadd.f32 %v1419, -0.16666654
    %v1421 = vmul.f32 %v1416, %v1420
    %v1422 = vadd.f32 %v1421, 1.0
    %v1423 = vmul.f32 %v1422, %v1407
    %vm1424 = vweird.f32 %v1280
    %v1425 = vadd.s32 %v1408, 3
    %v1426 = vand.u32 %v1425, 3
    %vm1427 = vcmp.lt.s32.totalorder %v1426, 2
    %vm1428 = vcmp.eq.s32.totalorder %v1426, 0
    %v1429 = vxor.u32 %v1423, 2147483648
    %v1430 = vsel %vm1428, %v1415, %v1429
    %vm1431 = vcmp.eq.s32.totalorder %v1426, 2
    %v1432 = vxor.u32 %v1415, 2147483648
    %v1433 = vsel %vm1431, %v1432, %v1423
    %v1434 = vsel %vm1427, %v1430, %v1433
    %v1435 = vsel %vm1424, nan, %v1434
    %s1436 = scalar_lea.vmem [#allocation5], 72
    %1437 = vst [vmem:[%s1436] sm:$0xff] %v1435
    %v1438 = vand.u32 2147483647, %v1280
    %vm1439 = vcmp.le.f32.partialorder %v1438, 0.7853982
    %vm1440 = vcmp.lt.s32.totalorder %v1280, 0
    %v1441 = vand.u32 %v1280, 2139095040
    %v1442 = vshrl.u32 %v1441, 23
    %v1443 = vsub.s32 %v1442, 127
    %v1444 = vand.u32 2147483647, %v1280
    %v1445 = vand.u32 %v1444, 8388607
    %v1446 = vor.u32 %v1445, 8388608
    %v1447 = vsub.s32 0, %v1446
    %v1448 = vadd.s32 %v1443, 1
    %vm1449 = vcmp.gt.s32.totalorder %v1448, 0
    %v1450 = vsel %vm1449, %v1448, 0
    %v1451 = vshrl.u32 %v1450, 5
    %v1452 = vand.u32 %v1450, 31
    %v1453 = vsub.s32 32, %v1452
    %v1454 = vshrl.u32 683565275, %v1453
    %v1455 = vshll.u32 683565275, %v1452
    %v1456 = vshrl.u32 2475754826, %v1453
    %v1457 = vor.u32 %v1455, %v1456
    %v1458 = vshll.u32 2475754826, %v1452
    %v1459 = vshrl.u32 2131351028, %v1453
    %v1460 = vor.u32 %v1458, %v1459
    %v1461 = vshll.u32 2131351028, %v1452
    %v1462 = vshrl.u32 2102212464, %v1453
    %v1463 = vor.u32 %v1461, %v1462
    %v1464 = vshll.u32 2102212464, %v1452
    %v1465 = vshrl.u32 920167782, %v1453
    %v1466 = vor.u32 %v1464, %v1465
    %v1467 = vshll.u32 920167782, %v1452
    %v1468 = vshrl.u32 1326507024, %v1453
    %v1469 = vor.u32 %v1467, %v1468
    %vm1470 = vcmp.lt.s32.totalorder %v1451, 1
    %vm1471 = vcmp.lt.s32.totalorder %v1451, 2
    %vm1472 = vcmp.lt.s32.totalorder %v1451, 3
    %vm1473 = vcmp.lt.s32.totalorder %v1451, 4
    %v1474 = vsel %vm1470, %v1454, %v1457
    %v1475 = vsel %vm1473, %v1463, 2102212464
    %v1476 = vsel %vm1472, %v1460, %v1475
    %v1477 = vsel %vm1471, %v1474, %v1476
    %v1478 = vsel %vm1470, %v1457, %v1460
    %v1479 = vsel %vm1473, %v1466, 920167782
    %v1480 = vsel %vm1472, %v1463, %v1479
    %v1481 = vsel %vm1471, %v1478, %v1480
    %v1482 = vsel %vm1470, %v1460, %v1463
    %v1483 = vsel %vm1473, %v1469, 1326507024
    %v1484 = vsel %vm1472, %v1466, %v1483
    %v1485 = vsel %vm1471, %v1482, %v1484
    %v1486 = vshll.u32 %v1446, 8
    %v1487 = vand.u32 %v1486, 65535
    %v1488 = vshrl.u32 %v1486, 16
    %v1489 = vand.u32 %v1485, 65535
    %v1490 = vshrl.u32 %v1485, 16
    %v1491 = vmul.u32 %v1487, %v1489
    %v1492 = vmul.u32 %v1487, %v1490
    %v1493 = vmul.u32 %v1488, %v1489
    %v1494 = vmul.u32 %v1488, %v1490
    %v1495 = vshll.u32 %v1492, 16
    %v1496 = vshrl.u32 %v1492, 16
    %v1497 = vshll.u32 %v1493, 16
    %v1498 = vshrl.u32 %v1493, 16
    %vm1499 = vc.u32 %v1491, %v1495
    %v1500 = vsel %vm1499, 1, 0
    %v1501 = vadd.s32 %v1491, %v1495
    %v1502 = vadd.s32 %v1494, %v1500
    %vm1503 = vc.u32 %v1501, %v1497
    %v1504 = vsel %vm1503, 1, 0
    %v1505 = vadd.s32 %v1501, %v1497
    %v1506 = vadd.s32 %v1502, %v1504
    %v1507 = vadd.s32 %v1506, %v1496
    %v1508 = vadd.s32 %v1507, %v1498
    %v1509 = vand.u32 %v1486, 65535
    %v1510 = vshrl.u32 %v1486, 16
    %v1511 = vand.u32 %v1481, 65535
    %v1512 = vshrl.u32 %v1481, 16
    %v1513 = vmul.u32 %v1509, %v1511
    %v1514 = vmul.u32 %v1509, %v1512
    %v1515 = vmul.u32 %v1510, %v1511
    %v1516 = vmul.u32 %v1510, %v1512
    %v1517 = vshll.u32 %v1514, 16
    %v1518 = vshrl.u32 %v1514, 16
    %v1519 = vshll.u32 %v1515, 16
    %v1520 = vshrl.u32 %v1515, 16
    %vm1521 = vc.u32 %v1513, %v1517
    %v1522 = vsel %vm1521, 1, 0
    %v1523 = vadd.s32 %v1513, %v1517
    %v1524 = vadd.s32 %v1516, %v1522
    %vm1525 = vc.u32 %v1523, %v1519
    %v1526 = vsel %vm1525, 1, 0
    %v1527 = vadd.s32 %v1523, %v1519
    %v1528 = vadd.s32 %v1524, %v1526
    %v1529 = vadd.s32 %v1528, %v1518
    %v1530 = vadd.s32 %v1529, %v1520
    %v1531 = vmul.u32 %v1486, %v1477
    %v1532 = vadd.s32 %v1508, %v1527
    %vm1533 = vc.u32 %v1508, %v1527
    %v1534 = vadd.s32 %v1530, 1
    %v1535 = vsel %vm1533, %v1534, %v1530
    %v1536 = vadd.s32 %v1531, %v1535
    %v1537 = vadd.s32 %v1536, 536870912
    %v1538 = vshrl.u32 %v1537, 30
    %v1539 = vshll.u32 %v1538, 30
    %v1540 = vsub.s32 %v1536, %v1539
    %vm1541 = vcmp.lt.s32.totalorder %v1540, 0
    %v1542 = vsub.s32 0, %v1540
    %v1543 = vsel %vm1541, %v1542, %v1540
    %v1544 = vclz %v1543
    %v1545 = vsub.s32 %v1544, 2
    %vm1546 = vcmp.gt.s32.totalorder 0, %v1545
    %v1547 = vsel %vm1546, 0, %v1545
    %v1548 = vsub.s32 32, %v1547
    %v1549 = vshll.u32 %v1540, %v1547
    %v1550 = vshrl.u32 %v1532, %v1548
    %v1551 = vor.u32 %v1549, %v1550
    %v1552 = vsub.s32 4294967266, %v1547
    %v1553 = vadd.s32 %v1552, 127
    %v1554 = vshll.u32 %v1553, 23
    %v1555 = vor.u32 4788187, %v1554
    %v1556 = vand.u32 2147483647, %v1555
    %v1558 = vcvt.s32.f32 %v1551
    %v1559 = vmul.f32 %v1558, %v1556
    %v1560 = vxor.u32 %v1559, 2147483648
    %v1561 = vsel %vm1440, %v1560, %v1559
    %v1562 = vsub.s32 4, %v1538
    %v1563 = vsel %vm1440, %v1562, %v1538
    %v1564 = vsel %vm1439, %v1280, %v1561
    %v1565 = vsel %vm1439, 0, %v1563
    %v1566 = vmul.f32 %v1564, %v1564
    %v1567 = vmul.f32 %v1566, -0.001358992
    %v1568 = vadd.f32 %v1567, 0.041655596
    %v1569 = vmul.f32 %v1566, %v1568
    %v1570 = vadd.f32 %v1569, -0.4999988
    %v1571 = vmul.f32 %v1566, %v1570
    %v1572 = vadd.f32 1.0, %v1571
    %v1573 = vmul.f32 %v1564, %v1564
    %v1574 = vmul.f32 %v1573, -0.00019511016
    %v1575 = vadd.f32 %v1574, 0.008332121
    %v1576 = vmul.f32 %v1573, %v1575
    %v1577 = vadd.f32 %v1576, -0.16666654
    %v1578 = vmul.f32 %v1573, %v1577
    %v1579 = vadd.f32 %v1578, 1.0
    %v1580 = vmul.f32 %v1579, %v1564
    %vm1581 = vweird.f32 %v1280
    %v1582 = vand.u32 %v1565, 3
    %vm1583 = vcmp.lt.s32.totalorder %v1582, 2
    %vm1584 = vcmp.eq.s32.totalorder %v1582, 0
    %v1585 = vxor.u32 %v1580, 2147483648
    %v1586 = vsel %vm1584, %v1572, %v1585
    %vm1587 = vcmp.eq.s32.totalorder %v1582, 2
    %v1588 = vxor.u32 %v1572, 2147483648
    %v1589 = vsel %vm1587, %v1588, %v1580
    %v1590 = vsel %vm1583, %v1586, %v1589
    %v1591 = vsel %vm1581, nan, %v1590
    %s1592 = scalar_lea.vmem [#allocation5], 80
    %1593 = vst [vmem:[%s1592] sm:$0xff] %v1591
    %v1594 = vmul.f32 %v23, 32.0
    %v1595 = vand.u32 2147483647, %v1594
    %vm1596 = vcmp.le.f32.partialorder %v1595, 0.7853982
    %vm1597 = vcmp.lt.s32.totalorder %v1594, 0
    %v1598 = vand.u32 %v1594, 2139095040
    %v1599 = vshrl.u32 %v1598, 23
    %v1600 = vsub.s32 %v1599, 127
    %v1601 = vand.u32 2147483647, %v1594
    %v1602 = vand.u32 %v1601, 8388607
    %v1603 = vor.u32 %v1602, 8388608
    %v1604 = vsub.s32 0, %v1603
    %v1605 = vadd.s32 %v1600, 1
    %vm1606 = vcmp.gt.s32.totalorder %v1605, 0
    %v1607 = vsel %vm1606, %v1605, 0
    %v1608 = vshrl.u32 %v1607, 5
    %v1609 = vand.u32 %v1607, 31
    %v1610 = vsub.s32 32, %v1609
    %v1611 = vshrl.u32 683565275, %v1610
    %v1612 = vshll.u32 683565275, %v1609
    %v1613 = vshrl.u32 2475754826, %v1610
    %v1614 = vor.u32 %v1612, %v1613
    %v1615 = vshll.u32 2475754826, %v1609
    %v1616 = vshrl.u32 2131351028, %v1610
    %v1617 = vor.u32 %v1615, %v1616
    %v1618 = vshll.u32 2131351028, %v1609
    %v1619 = vshrl.u32 2102212464, %v1610
    %v1620 = vor.u32 %v1618, %v1619
    %v1621 = vshll.u32 2102212464, %v1609
    %v1622 = vshrl.u32 920167782, %v1610
    %v1623 = vor.u32 %v1621, %v1622
    %v1624 = vshll.u32 920167782, %v1609
    %v1625 = vshrl.u32 1326507024, %v1610
    %v1626 = vor.u32 %v1624, %v1625
    %vm1627 = vcmp.lt.s32.totalorder %v1608, 1
    %vm1628 = vcmp.lt.s32.totalorder %v1608, 2
    %vm1629 = vcmp.lt.s32.totalorder %v1608, 3
    %vm1630 = vcmp.lt.s32.totalorder %v1608, 4
    %v1631 = vsel %vm1627, %v1611, %v1614
    %v1632 = vsel %vm1630, %v1620, 2102212464
    %v1633 = vsel %vm1629, %v1617, %v1632
    %v1634 = vsel %vm1628, %v1631, %v1633
    %v1635 = vsel %vm1627, %v1614, %v1617
    %v1636 = vsel %vm1630, %v1623, 920167782
    %v1637 = vsel %vm1629, %v1620, %v1636
    %v1638 = vsel %vm1628, %v1635, %v1637
    %v1639 = vsel %vm1627, %v1617, %v1620
    %v1640 = vsel %vm1630, %v1626, 1326507024
    %v1641 = vsel %vm1629, %v1623, %v1640
    %v1642 = vsel %vm1628, %v1639, %v1641
    %v1643 = vshll.u32 %v1603, 8
    %v1644 = vand.u32 %v1643, 65535
    %v1645 = vshrl.u32 %v1643, 16
    %v1646 = vand.u32 %v1642, 65535
    %v1647 = vshrl.u32 %v1642, 16
    %v1648 = vmul.u32 %v1644, %v1646
    %v1649 = vmul.u32 %v1644, %v1647
    %v1650 = vmul.u32 %v1645, %v1646
    %v1651 = vmul.u32 %v1645, %v1647
    %v1652 = vshll.u32 %v1649, 16
    %v1653 = vshrl.u32 %v1649, 16
    %v1654 = vshll.u32 %v1650, 16
    %v1655 = vshrl.u32 %v1650, 16
    %vm1656 = vc.u32 %v1648, %v1652
    %v1657 = vsel %vm1656, 1, 0
    %v1658 = vadd.s32 %v1648, %v1652
    %v1659 = vadd.s32 %v1651, %v1657
    %vm1660 = vc.u32 %v1658, %v1654
    %v1661 = vsel %vm1660, 1, 0
    %v1662 = vadd.s32 %v1658, %v1654
    %v1663 = vadd.s32 %v1659, %v1661
    %v1664 = vadd.s32 %v1663, %v1653
    %v1665 = vadd.s32 %v1664, %v1655
    %v1666 = vand.u32 %v1643, 65535
    %v1667 = vshrl.u32 %v1643, 16
    %v1668 = vand.u32 %v1638, 65535
    %v1669 = vshrl.u32 %v1638, 16
    %v1670 = vmul.u32 %v1666, %v1668
    %v1671 = vmul.u32 %v1666, %v1669
    %v1672 = vmul.u32 %v1667, %v1668
    %v1673 = vmul.u32 %v1667, %v1669
    %v1674 = vshll.u32 %v1671, 16
    %v1675 = vshrl.u32 %v1671, 16
    %v1676 = vshll.u32 %v1672, 16
    %v1677 = vshrl.u32 %v1672, 16
    %vm1678 = vc.u32 %v1670, %v1674
    %v1679 = vsel %vm1678, 1, 0
    %v1680 = vadd.s32 %v1670, %v1674
    %v1681 = vadd.s32 %v1673, %v1679
    %vm1682 = vc.u32 %v1680, %v1676
    %v1683 = vsel %vm1682, 1, 0
    %v1684 = vadd.s32 %v1680, %v1676
    %v1685 = vadd.s32 %v1681, %v1683
    %v1686 = vadd.s32 %v1685, %v1675
    %v1687 = vadd.s32 %v1686, %v1677
    %v1688 = vmul.u32 %v1643, %v1634
    %v1689 = vadd.s32 %v1665, %v1684
    %vm1690 = vc.u32 %v1665, %v1684
    %v1691 = vadd.s32 %v1687, 1
    %v1692 = vsel %vm1690, %v1691, %v1687
    %v1693 = vadd.s32 %v1688, %v1692
    %v1694 = vadd.s32 %v1693, 536870912
    %v1695 = vshrl.u32 %v1694, 30
    %v1696 = vshll.u32 %v1695, 30
    %v1697 = vsub.s32 %v1693, %v1696
    %vm1698 = vcmp.lt.s32.totalorder %v1697, 0
    %v1699 = vsub.s32 0, %v1697
    %v1700 = vsel %vm1698, %v1699, %v1697
    %v1701 = vclz %v1700
    %v1702 = vsub.s32 %v1701, 2
    %vm1703 = vcmp.gt.s32.totalorder 0, %v1702
    %v1704 = vsel %vm1703, 0, %v1702
    %v1705 = vsub.s32 32, %v1704
    %v1706 = vshll.u32 %v1697, %v1704
    %v1707 = vshrl.u32 %v1689, %v1705
    %v1708 = vor.u32 %v1706, %v1707
    %v1709 = vsub.s32 4294967266, %v1704
    %v1710 = vadd.s32 %v1709, 127
    %v1711 = vshll.u32 %v1710, 23
    %v1712 = vor.u32 4788187, %v1711
    %v1713 = vand.u32 2147483647, %v1712
    %v1715 = vcvt.s32.f32 %v1708
    %v1716 = vmul.f32 %v1715, %v1713
    %v1717 = vxor.u32 %v1716, 2147483648
    %v1718 = vsel %vm1597, %v1717, %v1716
    %v1719 = vsub.s32 4, %v1695
    %v1720 = vsel %vm1597, %v1719, %v1695
    %v1721 = vsel %vm1596, %v1594, %v1718
    %v1722 = vsel %vm1596, 0, %v1720
    %v1723 = vmul.f32 %v1721, %v1721
    %v1724 = vmul.f32 %v1723, -0.001358992
    %v1725 = vadd.f32 %v1724, 0.041655596
    %v1726 = vmul.f32 %v1723, %v1725
    %v1727 = vadd.f32 %v1726, -0.4999988
    %v1728 = vmul.f32 %v1723, %v1727
    %v1729 = vadd.f32 1.0, %v1728
    %v1730 = vmul.f32 %v1721, %v1721
    %v1731 = vmul.f32 %v1730, -0.00019511016
    %v1732 = vadd.f32 %v1731, 0.008332121
    %v1733 = vmul.f32 %v1730, %v1732
    %v1734 = vadd.f32 %v1733, -0.16666654
    %v1735 = vmul.f32 %v1730, %v1734
    %v1736 = vadd.f32 %v1735, 1.0
    %v1737 = vmul.f32 %v1736, %v1721
    %vm1738 = vweird.f32 %v1594
    %v1739 = vadd.s32 %v1722, 3
    %v1740 = vand.u32 %v1739, 3
    %vm1741 = vcmp.lt.s32.totalorder %v1740, 2
    %vm1742 = vcmp.eq.s32.totalorder %v1740, 0
    %v1743 = vxor.u32 %v1737, 2147483648
    %v1744 = vsel %vm1742, %v1729, %v1743
    %vm1745 = vcmp.eq.s32.totalorder %v1740, 2
    %v1746 = vxor.u32 %v1729, 2147483648
    %v1747 = vsel %vm1745, %v1746, %v1737
    %v1748 = vsel %vm1741, %v1744, %v1747
    %v1749 = vsel %vm1738, nan, %v1748
    %s1750 = scalar_lea.vmem [#allocation5], 88
    %1751 = vst [vmem:[%s1750] sm:$0xff] %v1749
    %v1752 = vand.u32 2147483647, %v1594
    %vm1753 = vcmp.le.f32.partialorder %v1752, 0.7853982
    %vm1754 = vcmp.lt.s32.totalorder %v1594, 0
    %v1755 = vand.u32 %v1594, 2139095040
    %v1756 = vshrl.u32 %v1755, 23
    %v1757 = vsub.s32 %v1756, 127
    %v1758 = vand.u32 2147483647, %v1594
    %v1759 = vand.u32 %v1758, 8388607
    %v1760 = vor.u32 %v1759, 8388608
    %v1761 = vsub.s32 0, %v1760
    %v1762 = vadd.s32 %v1757, 1
    %vm1763 = vcmp.gt.s32.totalorder %v1762, 0
    %v1764 = vsel %vm1763, %v1762, 0
    %v1765 = vshrl.u32 %v1764, 5
    %v1766 = vand.u32 %v1764, 31
    %v1767 = vsub.s32 32, %v1766
    %v1768 = vshrl.u32 683565275, %v1767
    %v1769 = vshll.u32 683565275, %v1766
    %v1770 = vshrl.u32 2475754826, %v1767
    %v1771 = vor.u32 %v1769, %v1770
    %v1772 = vshll.u32 2475754826, %v1766
    %v1773 = vshrl.u32 2131351028, %v1767
    %v1774 = vor.u32 %v1772, %v1773
    %v1775 = vshll.u32 2131351028, %v1766
    %v1776 = vshrl.u32 2102212464, %v1767
    %v1777 = vor.u32 %v1775, %v1776
    %v1778 = vshll.u32 2102212464, %v1766
    %v1779 = vshrl.u32 920167782, %v1767
    %v1780 = vor.u32 %v1778, %v1779
    %v1781 = vshll.u32 920167782, %v1766
    %v1782 = vshrl.u32 1326507024, %v1767
    %v1783 = vor.u32 %v1781, %v1782
    %vm1784 = vcmp.lt.s32.totalorder %v1765, 1
    %vm1785 = vcmp.lt.s32.totalorder %v1765, 2
    %vm1786 = vcmp.lt.s32.totalorder %v1765, 3
    %vm1787 = vcmp.lt.s32.totalorder %v1765, 4
    %v1788 = vsel %vm1784, %v1768, %v1771
    %v1789 = vsel %vm1787, %v1777, 2102212464
    %v1790 = vsel %vm1786, %v1774, %v1789
    %v1791 = vsel %vm1785, %v1788, %v1790
    %v1792 = vsel %vm1784, %v1771, %v1774
    %v1793 = vsel %vm1787, %v1780, 920167782
    %v1794 = vsel %vm1786, %v1777, %v1793
    %v1795 = vsel %vm1785, %v1792, %v1794
    %v1796 = vsel %vm1784, %v1774, %v1777
    %v1797 = vsel %vm1787, %v1783, 1326507024
    %v1798 = vsel %vm1786, %v1780, %v1797
    %v1799 = vsel %vm1785, %v1796, %v1798
    %v1800 = vshll.u32 %v1760, 8
    %v1801 = vand.u32 %v1800, 65535
    %v1802 = vshrl.u32 %v1800, 16
    %v1803 = vand.u32 %v1799, 65535
    %v1804 = vshrl.u32 %v1799, 16
    %v1805 = vmul.u32 %v1801, %v1803
    %v1806 = vmul.u32 %v1801, %v1804
    %v1807 = vmul.u32 %v1802, %v1803
    %v1808 = vmul.u32 %v1802, %v1804
    %v1809 = vshll.u32 %v1806, 16
    %v1810 = vshrl.u32 %v1806, 16
    %v1811 = vshll.u32 %v1807, 16
    %v1812 = vshrl.u32 %v1807, 16
    %vm1813 = vc.u32 %v1805, %v1809
    %v1814 = vsel %vm1813, 1, 0
    %v1815 = vadd.s32 %v1805, %v1809
    %v1816 = vadd.s32 %v1808, %v1814
    %vm1817 = vc.u32 %v1815, %v1811
    %v1818 = vsel %vm1817, 1, 0
    %v1819 = vadd.s32 %v1815, %v1811
    %v1820 = vadd.s32 %v1816, %v1818
    %v1821 = vadd.s32 %v1820, %v1810
    %v1822 = vadd.s32 %v1821, %v1812
    %v1823 = vand.u32 %v1800, 65535
    %v1824 = vshrl.u32 %v1800, 16
    %v1825 = vand.u32 %v1795, 65535
    %v1826 = vshrl.u32 %v1795, 16
    %v1827 = vmul.u32 %v1823, %v1825
    %v1828 = vmul.u32 %v1823, %v1826
    %v1829 = vmul.u32 %v1824, %v1825
    %v1830 = vmul.u32 %v1824, %v1826
    %v1831 = vshll.u32 %v1828, 16
    %v1832 = vshrl.u32 %v1828, 16
    %v1833 = vshll.u32 %v1829, 16
    %v1834 = vshrl.u32 %v1829, 16
    %vm1835 = vc.u32 %v1827, %v1831
    %v1836 = vsel %vm1835, 1, 0
    %v1837 = vadd.s32 %v1827, %v1831
    %v1838 = vadd.s32 %v1830, %v1836
    %vm1839 = vc.u32 %v1837, %v1833
    %v1840 = vsel %vm1839, 1, 0
    %v1841 = vadd.s32 %v1837, %v1833
    %v1842 = vadd.s32 %v1838, %v1840
    %v1843 = vadd.s32 %v1842, %v1832
    %v1844 = vadd.s32 %v1843, %v1834
    %v1845 = vmul.u32 %v1800, %v1791
    %v1846 = vadd.s32 %v1822, %v1841
    %vm1847 = vc.u32 %v1822, %v1841
    %v1848 = vadd.s32 %v1844, 1
    %v1849 = vsel %vm1847, %v1848, %v1844
    %v1850 = vadd.s32 %v1845, %v1849
    %v1851 = vadd.s32 %v1850, 536870912
    %v1852 = vshrl.u32 %v1851, 30
    %v1853 = vshll.u32 %v1852, 30
    %v1854 = vsub.s32 %v1850, %v1853
    %vm1855 = vcmp.lt.s32.totalorder %v1854, 0
    %v1856 = vsub.s32 0, %v1854
    %v1857 = vsel %vm1855, %v1856, %v1854
    %v1858 = vclz %v1857
    %v1859 = vsub.s32 %v1858, 2
    %vm1860 = vcmp.gt.s32.totalorder 0, %v1859
    %v1861 = vsel %vm1860, 0, %v1859
    %v1862 = vsub.s32 32, %v1861
    %v1863 = vshll.u32 %v1854, %v1861
    %v1864 = vshrl.u32 %v1846, %v1862
    %v1865 = vor.u32 %v1863, %v1864
    %v1866 = vsub.s32 4294967266, %v1861
    %v1867 = vadd.s32 %v1866, 127
    %v1868 = vshll.u32 %v1867, 23
    %v1869 = vor.u32 4788187, %v1868
    %v1870 = vand.u32 2147483647, %v1869
    %v1872 = vcvt.s32.f32 %v1865
    %v1873 = vmul.f32 %v1872, %v1870
    %v1874 = vxor.u32 %v1873, 2147483648
    %v1875 = vsel %vm1754, %v1874, %v1873
    %v1876 = vsub.s32 4, %v1852
    %v1877 = vsel %vm1754, %v1876, %v1852
    %v1878 = vsel %vm1753, %v1594, %v1875
    %v1879 = vsel %vm1753, 0, %v1877
    %v1880 = vmul.f32 %v1878, %v1878
    %v1881 = vmul.f32 %v1880, -0.001358992
    %v1882 = vadd.f32 %v1881, 0.041655596
    %v1883 = vmul.f32 %v1880, %v1882
    %v1884 = vadd.f32 %v1883, -0.4999988
    %v1885 = vmul.f32 %v1880, %v1884
    %v1886 = vadd.f32 1.0, %v1885
    %v1887 = vmul.f32 %v1878, %v1878
    %v1888 = vmul.f32 %v1887, -0.00019511016
    %v1889 = vadd.f32 %v1888, 0.008332121
    %v1890 = vmul.f32 %v1887, %v1889
    %v1891 = vadd.f32 %v1890, -0.16666654
    %v1892 = vmul.f32 %v1887, %v1891
    %v1893 = vadd.f32 %v1892, 1.0
    %v1894 = vmul.f32 %v1893, %v1878
    %vm1895 = vweird.f32 %v1594
    %v1896 = vand.u32 %v1879, 3
    %vm1897 = vcmp.lt.s32.totalorder %v1896, 2
    %vm1898 = vcmp.eq.s32.totalorder %v1896, 0
    %v1899 = vxor.u32 %v1894, 2147483648
    %v1900 = vsel %vm1898, %v1886, %v1899
    %vm1901 = vcmp.eq.s32.totalorder %v1896, 2
    %v1902 = vxor.u32 %v1886, 2147483648
    %v1903 = vsel %vm1901, %v1902, %v1894
    %v1904 = vsel %vm1897, %v1900, %v1903
    %v1905 = vsel %vm1895, nan, %v1904
    %s1906 = scalar_lea.vmem [#allocation5], 96
    %1907 = vst [vmem:[%s1906] sm:$0xff] %v1905
    // Predicated region
    $region10: #{tpu_custom_call.1} parent=1 // pred_check
      _
    $region11: #{tpu_custom_call.1} parent=1 // pred_check_branch
      %1909 = sbr.rel (0) target = $region13
    $region12: #{tpu_custom_call.1} parent=1 // pred_region
      %1911 = vsyncadd [#allocation4], 0
      %s1912 = sshll.u32 [#allocation5], 4
      %s1913 = int_to_ptr.vmem [resolvable:$true] %s1912
      %s1914 = sshll.u32 %s1, 4
      %s1915 = int_to_ptr.hbm [resolvable:$true] %s1914
      %1920 = dma.vmem_to_hbm [thread:$0]  %s1913, 1664, %s1915, [#allocation4], 128, 128, 8
    $region13: #{tpu_custom_call.1} parent=1 // pred_fallthru
      _
    // Predicated region
    $region14: #{tpu_custom_call.1} parent=1 // pred_check
      _
    $region15: #{tpu_custom_call.1} parent=1 // pred_check_branch
      %1922 = sbr.rel (0) target = $region17
    $region16: #{tpu_custom_call.1} parent=1 // pred_region
      %1924 = dma.done [#allocation4], 1664
    $region17: #{tpu_custom_call.1} parent=1 // pred_fallthru
      _
    %1925 = vsyncpa [#allocation3], 1
    %1926 = vsyncpa [#allocation4], 1

</llo_original>
